<compile_context>
chip_gen: v6e
topology: v6e:2x2x1
jax: 0.10.0
libtpu: 0.0.40
codegen_flags: <defaults>
</compile_context>

<pallas_src>
import math

import jax
import jax.numpy as jnp
from jax import lax
from jax.experimental import pallas as pl
from jax.experimental.pallas import tpu as pltpu


LN_EPS = 1e-6  # nn.LayerNorm(hidden_size, elementwise_affine=False, eps=1e-06)


def _layer_norm(v):
    # affine-free LayerNorm, biased variance over the last dim (f32 math).
    mu = jnp.mean(v, axis=-1, keepdims=True)
    var = jnp.mean((v - mu) ** 2, axis=-1, keepdims=True)
    return (v - mu) * lax.rsqrt(var + LN_EPS)


def _gelu_exact(v):
    # torch nn.GELU() default (approximate='none') -> erf-based GELU.
    return 0.5 * v * (1.0 + lax.erf(v * (1.0 / math.sqrt(2.0))))


def _attn_block_kernel(xq_ref, xf_ref,
                       wq_ref, bq_ref, wk_ref, bk_ref, wv_ref, bv_ref,
                       wo_ref, bo_ref, w1_ref, b1_ref, w2_ref, b2_ref,
                       o_ref, acc_ref):
    """Grid = (batch, query_tile, head). Head axis is a reduction ('arbitrary')."""
    h = pl.program_id(2)

    @pl.when(h == 0)
    def _():
        acc_ref[...] = jnp.zeros_like(acc_ref)

    # ---- norm1 (f32 math) --------------------------------------------------
    xq = xq_ref[0].astype(jnp.float32)                       # (TQ, H)
    xn_q = _layer_norm(xq)
    xn_q_b = xn_q.astype(jnp.bfloat16)
    xn_f_b = _layer_norm(xf_ref[0].astype(jnp.float32)).astype(jnp.bfloat16)  # (N, H)

    # ---- per-head projections (bf16 MXU operands, f32 accumulation) --------
    # 1/sqrt(head_dim) is pre-folded into wq / bq in the wrapper.
    q = jnp.dot(xn_q_b, wq_ref[0], preferred_element_type=jnp.float32) + bq_ref[0]  # (TQ, hd)
    k = jnp.dot(xn_f_b, wk_ref[0], preferred_element_type=jnp.float32) + bk_ref[0]  # (N, hd)
    v = jnp.dot(xn_f_b, wv_ref[0], preferred_element_type=jnp.float32) + bv_ref[0]  # (N, hd)

    # scores: (TQ, hd) x (N, hd)^T -> (TQ, N), contraction expressed directly
    # via dot_general (no explicit transpose op).
    s = lax.dot_general(q.astype(jnp.bfloat16), k.astype(jnp.bfloat16),
                        (((1,), (1,)), ((), ())),
                        preferred_element_type=jnp.float32)

    # softmax in f32; denominator reciprocal on the EUP.
    s = s - jnp.max(s, axis=-1, keepdims=True)
    p = jnp.exp(s)
    p = p * pl.reciprocal(jnp.sum(p, axis=-1, keepdims=True), approx=True)

    o_h = jnp.dot(p.astype(jnp.bfloat16), v.astype(jnp.bfloat16),
                  preferred_element_type=jnp.float32)        # (TQ, hd)

    # accumulate this head's slice of the output projection.
    acc_ref[...] += jnp.dot(o_h.astype(jnp.bfloat16), wo_ref[0],
                            preferred_element_type=jnp.float32)  # (TQ, H)

    # ---- finalize on the last head: residual + norm2 + MLP ------------------
    @pl.when(h == pl.num_programs(2) - 1)
    def _():
        # Residual intentionally uses the *normalized* x (module quirk).
        x1 = xn_q + acc_ref[...] + bo_ref[...]
        x2n = _layer_norm(x1)
        hid = jnp.dot(x2n.astype(jnp.bfloat16), w1_ref[...],
                      preferred_element_type=jnp.float32) + b1_ref[...]
        hid = _gelu_exact(hid)
        mlp = jnp.dot(hid.astype(jnp.bfloat16), w2_ref[...],
                      preferred_element_type=jnp.float32) + b2_ref[...]
        o_ref[0] = (x1 + mlp).astype(o_ref.dtype)


def attn_block_forward(x, params, num_heads, tq=None):
    B, N, H = x.shape
    assert H % num_heads == 0
    hd = H // num_heads
    Hm = params["fc1_w"].shape[0]
    tq = N if tq is None else tq
    assert N % tq == 0

    scale = 1.0 / math.sqrt(hd)
    f32, bf16 = jnp.float32, jnp.bfloat16

    w_in = params["in_proj_w"].astype(f32)       # (3H, H), torch (out, in)
    b_in = params["in_proj_b"].astype(f32)       # (3H,)

    def per_head_in(w_rows, b_rows, sc):
        # x @ W^T  ->  transpose to (H_in, H_out), split the output dim by head.
        wt = (w_rows.T * sc).reshape(H, num_heads, hd).transpose(1, 0, 2)  # (nh, H, hd)
        bb = (b_rows * sc).reshape(num_heads, 1, hd)
        return wt.astype(bf16), bb.astype(f32)

    wq, bq = per_head_in(w_in[0 * H:1 * H], b_in[0 * H:1 * H], scale)  # scale folded
    wk, bk = per_head_in(w_in[1 * H:2 * H], b_in[1 * H:2 * H], 1.0)
    wv, bv = per_head_in(w_in[2 * H:3 * H], b_in[2 * H:3 * H], 1.0)

    wo = params["out_proj_w"].astype(f32).T.reshape(num_heads, hd, H).astype(bf16)
    bo = params["out_proj_b"].astype(f32).reshape(1, H)
    w1 = params["fc1_w"].astype(f32).T.astype(bf16)        # (H, Hm)
    b1 = params["fc1_b"].astype(f32).reshape(1, Hm)
    w2 = params["fc2_w"].astype(f32).T.astype(bf16)        # (Hm, H)
    b2 = params["fc2_b"].astype(f32).reshape(1, H)

    def head_spec(shape):
        return pl.BlockSpec((1,) + shape, lambda b, qi, h: (h, 0, 0))

    def const_spec(shape):
        return pl.BlockSpec(shape, lambda b, qi, h: (0,) * len(shape))

    grid_spec = pltpu.PrefetchScalarGridSpec(
        num_scalar_prefetch=0,
        grid=(B, N // tq, num_heads),
        in_specs=[
            pl.BlockSpec((1, tq, H), lambda b, qi, h: (b, qi, 0)),   # query tile
            pl.BlockSpec((1, N, H), lambda b, qi, h: (b, 0, 0)),     # full seq (K/V src)
            head_spec((H, hd)), head_spec((1, hd)),                  # q proj (scaled)
            head_spec((H, hd)), head_spec((1, hd)),                  # k proj
            head_spec((H, hd)), head_spec((1, hd)),                  # v proj
            head_spec((hd, H)), const_spec((1, H)),                  # out proj
            const_spec((H, Hm)), const_spec((1, Hm)),                # mlp fc1
            const_spec((Hm, H)), const_spec((1, H)),                 # mlp fc2
        ],
        out_specs=pl.BlockSpec((1, tq, H), lambda b, qi, h: (b, qi, 0)),
        scratch_shapes=[pltpu.VMEM((tq, H), jnp.float32)],
    )

    flops = B * (2 * N * H * 3 * H        # qkv projection
                 + 4 * N * N * H          # scores + p@v
                 + 2 * N * H * H          # output projection
                 + 4 * N * H * Hm)        # MLP
    transcendentals = B * (num_heads * N * N + N * Hm)
    weight_bytes = 2 * (3 * H * H + H * H + 2 * H * Hm)     # bf16 weights
    bytes_accessed = 2 * x.size * x.dtype.itemsize + weight_bytes

    return pl.pallas_call(
        _attn_block_kernel,
        out_shape=jax.ShapeDtypeStruct((B, N, H), x.dtype),
        grid_spec=grid_spec,
        compiler_params=pltpu.CompilerParams(
            dimension_semantics=("parallel", "parallel", "arbitrary"),
            vmem_limit_bytes=64 * 1024 * 1024,
        ),
        cost_estimate=pl.CostEstimate(
            flops=int(flops),
            transcendentals=int(transcendentals),
            bytes_accessed=int(bytes_accessed)),
    )(x, x, wq, bq, wk, bk, wv, bv, wo, bo, w1, b1, w2, b2)


# ---------------- pure-JAX reference (mirrors the PyTorch module) ------------
def attn_block_ref(x, params, num_heads):
    B, N, H = x.shape
    hd = H // num_heads

    xn = _layer_norm(x)
    qkv = xn @ params["in_proj_w"].T + params["in_proj_b"]
    q, k, v = jnp.split(qkv, 3, axis=-1)

    def split_heads(t):
        return t.reshape(B, N, num_heads, hd).transpose(0, 2, 1, 3)

    qh, kh, vh = map(split_heads, (q, k, v))
    s = (qh * (1.0 / math.sqrt(hd))) @ kh.transpose(0, 1, 3, 2)
    p = jax.nn.softmax(s, axis=-1)
    o = (p @ vh).transpose(0, 2, 1, 3).reshape(B, N, H)
    attn_out = o @ params["out_proj_w"].T + params["out_proj_b"]

    x1 = xn + attn_out
    x2n = _layer_norm(x1)
    hid = _gelu_exact(x2n @ params["fc1_w"].T + params["fc1_b"])
    mlp_out = hid @ params["fc2_w"].T + params["fc2_b"]
    return x1 + mlp_out


if __name__ == "__main__":
    B, N, H = 2, 8, 32
    num_heads = 4
    mlp_ratio = 4.0
    Hm = int(H * mlp_ratio)

    key = jax.random.PRNGKey(0)
    keys = jax.random.split(key, 10)

    params = {
        "in_proj_w": 0.05 * jax.random.normal(keys[0], (3 * H, H), jnp.float32),
        "in_proj_b": 0.05 * jax.random.normal(keys[1], (3 * H,), jnp.float32),
        "out_proj_w": 0.05 * jax.random.normal(keys[2], (H, H), jnp.float32),
        "out_proj_b": 0.05 * jax.random.normal(keys[3], (H,), jnp.float32),
        "fc1_w": 0.05 * jax.random.normal(keys[4], (Hm, H), jnp.float32),
        "fc1_b": 0.05 * jax.random.normal(keys[5], (Hm,), jnp.float32),
        "fc2_w": 0.05 * jax.random.normal(keys[6], (H, Hm), jnp.float32),
        "fc2_b": 0.05 * jax.random.normal(keys[7], (H,), jnp.float32),
    }
    x = jax.random.normal(keys[8], (B, N, H), jnp.float32)

    out = attn_block_forward(x, params, num_heads)
    out = jax.block_until_ready(out)

    ref = attn_block_ref(x, params, num_heads)
    assert out.shape == (B, N, H)
    # bf16 MXU operands + approx softmax reciprocal -> tolerance widened vs f32.
    assert jnp.allclose(out, ref, atol=2e-2, rtol=2e-2), (
        float(jnp.max(jnp.abs(out - ref))))

    print("KERNEL_OK")
</pallas_src>

<mosaic_0001>
module attributes {stable_mosaic.version = 11 : i64} {
  func.func @_attn_block_kernel(%arg0: i32, %arg1: i32, %arg2: i32, %arg3: memref<1x8x32xf32, #tpu.memory_space<vmem>>, %arg4: memref<1x8x32xf32, #tpu.memory_space<vmem>>, %arg5: memref<1x32x8xbf16, #tpu.memory_space<vmem>>, %arg6: memref<1x1x8xf32, #tpu.memory_space<vmem>>, %arg7: memref<1x32x8xbf16, #tpu.memory_space<vmem>>, %arg8: memref<1x1x8xf32, #tpu.memory_space<vmem>>, %arg9: memref<1x32x8xbf16, #tpu.memory_space<vmem>>, %arg10: memref<1x1x8xf32, #tpu.memory_space<vmem>>, %arg11: memref<1x8x32xbf16, #tpu.memory_space<vmem>>, %arg12: memref<1x32xf32, #tpu.memory_space<vmem>>, %arg13: memref<32x128xbf16, #tpu.memory_space<vmem>>, %arg14: memref<1x128xf32, #tpu.memory_space<vmem>>, %arg15: memref<128x32xbf16, #tpu.memory_space<vmem>>, %arg16: memref<1x32xf32, #tpu.memory_space<vmem>>, %arg17: memref<1x8x32xf32, #tpu.memory_space<vmem>>, %arg18: memref<8x32xf32, #tpu.memory_space<vmem>>) attributes {dimension_semantics = [#tpu.dimension_semantics<parallel>, #tpu.dimension_semantics<parallel>, #tpu.dimension_semantics<arbitrary>], iteration_bounds = array<i64: 2, 1, 4>, scalar_prefetch = 0 : i64, scratch_operands = 1 : i64, tpu.core_type = #tpu.core_type<tc>, window_params = [{transform_indices = @transform_0, window_bounds = array<i64: 1, 8, 32>}, {transform_indices = @transform_1, window_bounds = array<i64: 1, 8, 32>}, {transform_indices = @transform_2, window_bounds = array<i64: 1, 32, 8>}, {transform_indices = @transform_3, window_bounds = array<i64: 1, 1, 8>}, {transform_indices = @transform_4, window_bounds = array<i64: 1, 32, 8>}, {transform_indices = @transform_5, window_bounds = array<i64: 1, 1, 8>}, {transform_indices = @transform_6, window_bounds = array<i64: 1, 32, 8>}, {transform_indices = @transform_7, window_bounds = array<i64: 1, 1, 8>}, {transform_indices = @transform_8, window_bounds = array<i64: 1, 8, 32>}, {pipeline_mode = #tpu.pipeline_mode<synchronous>, transform_indices = @transform_9, window_bounds = array<i64: 1, 32>}, {pipeline_mode = #tpu.pipeline_mode<synchronous>, transform_indices = @transform_10, window_bounds = array<i64: 32, 128>}, {pipeline_mode = #tpu.pipeline_mode<synchronous>, transform_indices = @transform_11, window_bounds = array<i64: 1, 128>}, {pipeline_mode = #tpu.pipeline_mode<synchronous>, transform_indices = @transform_12, window_bounds = array<i64: 128, 32>}, {pipeline_mode = #tpu.pipeline_mode<synchronous>, transform_indices = @transform_13, window_bounds = array<i64: 1, 32>}, {transform_indices = @transform_14, window_bounds = array<i64: 1, 8, 32>}]} {
    %c0_i32 = arith.constant 0 : i32
    %0 = arith.cmpi eq, %arg2, %c0_i32 : i32
    %1 = arith.extui %0 : i1 to i32
    %c0_i32_0 = arith.constant 0 : i32
    %2 = arith.cmpi ne, %1, %c0_i32_0 : i32
    scf.if %2 {
      %cst_49 = arith.constant 0.000000e+00 : f32
      %92 = vector.broadcast %cst_49 : f32 to vector<8x32xf32>
      %c0_50 = arith.constant 0 : index
      %c0_51 = arith.constant 0 : index
      %93 = vector.load %arg18[%c0_50, %c0_51] : memref<8x32xf32, #tpu.memory_space<vmem>>, vector<8x32xf32>
      tpu.vector_store %arg18[%c0_50, %c0_51], %92 {strides = array<i32>} : memref<8x32xf32, #tpu.memory_space<vmem>>, vector<8x32xf32>,
    } else {
    }
    %c0 = arith.constant 0 : index
    %c0_1 = arith.constant 0 : index
    %c0_2 = arith.constant 0 : index
    %3 = vector.load %arg3[%c0, %c0_1, %c0_2] : memref<1x8x32xf32, #tpu.memory_space<vmem>>, vector<1x8x32xf32>
    %4 = vector.shape_cast %3 : vector<1x8x32xf32> to vector<8x32xf32>
    %cst = arith.constant dense<0.000000e+00> : vector<8xf32>
    %5 = vector.multi_reduction <add>, %4, %cst [1] : vector<8x32xf32> to vector<8xf32>
    %6 = vector.shape_cast %5 : vector<8xf32> to vector<8x1xf32>
    %cst_3 = arith.constant 3.200000e+01 : f32
    %7 = vector.broadcast %cst_3 : f32 to vector<8x1xf32>
    %8 = arith.divf %6, %7 : vector<8x1xf32>
    %9 = vector.broadcast %8 : vector<8x1xf32> to vector<8x32xf32>
    %10 = arith.subf %4, %9 : vector<8x32xf32>
    %11 = arith.mulf %10, %10 : vector<8x32xf32>
    %cst_4 = arith.constant dense<0.000000e+00> : vector<8xf32>
    %12 = vector.multi_reduction <add>, %11, %cst_4 [1] : vector<8x32xf32> to vector<8xf32>
    %13 = vector.shape_cast %12 : vector<8xf32> to vector<8x1xf32>
    %cst_5 = arith.constant 3.200000e+01 : f32
    %14 = vector.broadcast %cst_5 : f32 to vector<8x1xf32>
    %15 = arith.divf %13, %14 : vector<8x1xf32>
    %16 = vector.broadcast %8 : vector<8x1xf32> to vector<8x32xf32>
    %17 = arith.subf %4, %16 : vector<8x32xf32>
    %cst_6 = arith.constant 9.99999997E-7 : f32
    %18 = vector.broadcast %cst_6 : f32 to vector<8x1xf32>
    %19 = arith.addf %15, %18 : vector<8x1xf32>
    %20 = math.rsqrt %19 : vector<8x1xf32>
    %21 = vector.broadcast %20 : vector<8x1xf32> to vector<8x32xf32>
    %22 = arith.mulf %17, %21 : vector<8x32xf32>
    %23 = arith.truncf %22 : vector<8x32xf32> to vector<8x32xbf16>
    %c0_7 = arith.constant 0 : index
    %c0_8 = arith.constant 0 : index
    %c0_9 = arith.constant 0 : index
    %24 = vector.load %arg4[%c0_7, %c0_8, %c0_9] : memref<1x8x32xf32, #tpu.memory_space<vmem>>, vector<1x8x32xf32>
    %25 = vector.shape_cast %24 : vector<1x8x32xf32> to vector<8x32xf32>
    %cst_10 = arith.constant dense<0.000000e+00> : vector<8xf32>
    %26 = vector.multi_reduction <add>, %25, %cst_10 [1] : vector<8x32xf32> to vector<8xf32>
    %27 = vector.shape_cast %26 : vector<8xf32> to vector<8x1xf32>
    %cst_11 = arith.constant 3.200000e+01 : f32
    %28 = vector.broadcast %cst_11 : f32 to vector<8x1xf32>
    %29 = arith.divf %27, %28 : vector<8x1xf32>
    %30 = vector.broadcast %29 : vector<8x1xf32> to vector<8x32xf32>
    %31 = arith.subf %25, %30 : vector<8x32xf32>
    %32 = arith.mulf %31, %31 : vector<8x32xf32>
    %cst_12 = arith.constant dense<0.000000e+00> : vector<8xf32>
    %33 = vector.multi_reduction <add>, %32, %cst_12 [1] : vector<8x32xf32> to vector<8xf32>
    %34 = vector.shape_cast %33 : vector<8xf32> to vector<8x1xf32>
    %cst_13 = arith.constant 3.200000e+01 : f32
    %35 = vector.broadcast %cst_13 : f32 to vector<8x1xf32>
    %36 = arith.divf %34, %35 : vector<8x1xf32>
    %37 = vector.broadcast %29 : vector<8x1xf32> to vector<8x32xf32>
    %38 = arith.subf %25, %37 : vector<8x32xf32>
    %cst_14 = arith.constant 9.99999997E-7 : f32
    %39 = vector.broadcast %cst_14 : f32 to vector<8x1xf32>
    %40 = arith.addf %36, %39 : vector<8x1xf32>
    %41 = math.rsqrt %40 : vector<8x1xf32>
    %42 = vector.broadcast %41 : vector<8x1xf32> to vector<8x32xf32>
    %43 = arith.mulf %38, %42 : vector<8x32xf32>
    %44 = arith.truncf %43 : vector<8x32xf32> to vector<8x32xbf16>
    %c0_15 = arith.constant 0 : index
    %c0_16 = arith.constant 0 : index
    %c0_17 = arith.constant 0 : index
    %45 = vector.load %arg5[%c0_15, %c0_16, %c0_17] : memref<1x32x8xbf16, #tpu.memory_space<vmem>>, vector<1x32x8xbf16>
    %46 = vector.shape_cast %45 : vector<1x32x8xbf16> to vector<32x8xbf16>
    %cst_18 = arith.constant dense<0.000000e+00> : vector<8x8xf32>
    %47 = tpu.matmul %23, %46, %cst_18 {dimension_numbers = #tpu.dot_dimension_numbers<[1], [0], [0], [1], [0, 0, 1, 1], [], []>} : vector<8x32xbf16>, vector<32x8xbf16>, vector<8x8xf32> -> vector<8x8xf32>
    %c0_19 = arith.constant 0 : index
    %c0_20 = arith.constant 0 : index
    %c0_21 = arith.constant 0 : index
    %48 = vector.load %arg6[%c0_19, %c0_20, %c0_21] : memref<1x1x8xf32, #tpu.memory_space<vmem>>, vector<1x1x8xf32>
    %49 = vector.shape_cast %48 : vector<1x1x8xf32> to vector<1x8xf32>
    %50 = vector.broadcast %49 : vector<1x8xf32> to vector<8x8xf32>
    %51 = arith.addf %47, %50 : vector<8x8xf32>
    %c0_22 = arith.constant 0 : index
    %c0_23 = arith.constant 0 : index
    %c0_24 = arith.constant 0 : index
    %52 = vector.load %arg7[%c0_22, %c0_23, %c0_24] : memref<1x32x8xbf16, #tpu.memory_space<vmem>>, vector<1x32x8xbf16>
    %53 = vector.shape_cast %52 : vector<1x32x8xbf16> to vector<32x8xbf16>
    %cst_25 = arith.constant dense<0.000000e+00> : vector<8x8xf32>
    %54 = tpu.matmul %44, %53, %cst_25 {dimension_numbers = #tpu.dot_dimension_numbers<[1], [0], [0], [1], [0, 0, 1, 1], [], []>} : vector<8x32xbf16>, vector<32x8xbf16>, vector<8x8xf32> -> vector<8x8xf32>
    %c0_26 = arith.constant 0 : index
    %c0_27 = arith.constant 0 : index
    %c0_28 = arith.constant 0 : index
    %55 = vector.load %arg8[%c0_26, %c0_27, %c0_28] : memref<1x1x8xf32, #tpu.memory_space<vmem>>, vector<1x1x8xf32>
    %56 = vector.shape_cast %55 : vector<1x1x8xf32> to vector<1x8xf32>
    %57 = vector.broadcast %56 : vector<1x8xf32> to vector<8x8xf32>
    %58 = arith.addf %54, %57 : vector<8x8xf32>
    %c0_29 = arith.constant 0 : index
    %c0_30 = arith.constant 0 : index
    %c0_31 = arith.constant 0 : index
    %59 = vector.load %arg9[%c0_29, %c0_30, %c0_31] : memref<1x32x8xbf16, #tpu.memory_space<vmem>>, vector<1x32x8xbf16>
    %60 = vector.shape_cast %59 : vector<1x32x8xbf16> to vector<32x8xbf16>
    %cst_32 = arith.constant dense<0.000000e+00> : vector<8x8xf32>
    %61 = tpu.matmul %44, %60, %cst_32 {dimension_numbers = #tpu.dot_dimension_numbers<[1], [0], [0], [1], [0, 0, 1, 1], [], []>} : vector<8x32xbf16>, vector<32x8xbf16>, vector<8x8xf32> -> vector<8x8xf32>
    %c0_33 = arith.constant 0 : index
    %c0_34 = arith.constant 0 : index
    %c0_35 = arith.constant 0 : index
    %62 = vector.load %arg10[%c0_33, %c0_34, %c0_35] : memref<1x1x8xf32, #tpu.memory_space<vmem>>, vector<1x1x8xf32>
    %63 = vector.shape_cast %62 : vector<1x1x8xf32> to vector<1x8xf32>
    %64 = vector.broadcast %63 : vector<1x8xf32> to vector<8x8xf32>
    %65 = arith.addf %61, %64 : vector<8x8xf32>
    %66 = arith.truncf %51 : vector<8x8xf32> to vector<8x8xbf16>
    %67 = arith.truncf %58 : vector<8x8xf32> to vector<8x8xbf16>
    %cst_36 = arith.constant dense<0.000000e+00> : vector<8x8xf32>
    %68 = tpu.matmul %66, %67, %cst_36 {dimension_numbers = #tpu.dot_dimension_numbers<[1], [1], [0], [0], [0, 0, 1, 0], [], []>} : vector<8x8xbf16>, vector<8x8xbf16>, vector<8x8xf32> -> vector<8x8xf32>
    %cst_37 = arith.constant dense<0xFF800000> : vector<8xf32>
    %69 = vector.multi_reduction <maximumf>, %68, %cst_37 [1] : vector<8x8xf32> to vector<8xf32>
    %70 = vector.shape_cast %69 : vector<8xf32> to vector<8x1xf32>
    %71 = vector.broadcast %70 : vector<8x1xf32> to vector<8x8xf32>
    %72 = arith.subf %68, %71 : vector<8x8xf32>
    %73 = math.exp %72 : vector<8x8xf32>
    %cst_38 = arith.constant dense<0.000000e+00> : vector<8xf32>
    %74 = vector.multi_reduction <add>, %73, %cst_38 [1] : vector<8x8xf32> to vector<8xf32>
    %75 = vector.shape_cast %74 : vector<8xf32> to vector<8x1xf32>
    %76 = tpu.reciprocal %75 {approx = true} : vector<8x1xf32> -> vector<8x1xf32>
    %77 = vector.broadcast %76 : vector<8x1xf32> to vector<8x8xf32>
    %78 = arith.mulf %73, %77 : vector<8x8xf32>
    %79 = arith.truncf %78 : vector<8x8xf32> to vector<8x8xbf16>
    %80 = arith.truncf %65 : vector<8x8xf32> to vector<8x8xbf16>
    %cst_39 = arith.constant dense<0.000000e+00> : vector<8x8xf32>
    %81 = tpu.matmul %79, %80, %cst_39 {dimension_numbers = #tpu.dot_dimension_numbers<[1], [0], [0], [1], [0, 0, 1, 1], [], []>} : vector<8x8xbf16>, vector<8x8xbf16>, vector<8x8xf32> -> vector<8x8xf32>
    %c0_40 = arith.constant 0 : index
    %c0_41 = arith.constant 0 : index
    %82 = vector.load %arg18[%c0_40, %c0_41] : memref<8x32xf32, #tpu.memory_space<vmem>>, vector<8x32xf32>
    %83 = arith.truncf %81 : vector<8x8xf32> to vector<8x8xbf16>
    %c0_42 = arith.constant 0 : index
    %c0_43 = arith.constant 0 : index
    %c0_44 = arith.constant 0 : index
    %84 = vector.load %arg11[%c0_42, %c0_43, %c0_44] : memref<1x8x32xbf16, #tpu.memory_space<vmem>>, vector<1x8x32xbf16>
    %85 = vector.shape_cast %84 : vector<1x8x32xbf16> to vector<8x32xbf16>
    %cst_45 = arith.constant dense<0.000000e+00> : vector<8x32xf32>
    %86 = tpu.matmul %83, %85, %cst_45 {dimension_numbers = #tpu.dot_dimension_numbers<[1], [0], [0], [1], [0, 0, 1, 1], [], []>} : vector<8x8xbf16>, vector<8x32xbf16>, vector<8x32xf32> -> vector<8x32xf32>
    %87 = arith.addf %82, %86 : vector<8x32xf32>
    %c0_46 = arith.constant 0 : index
    %c0_47 = arith.constant 0 : index
    %88 = vector.load %arg18[%c0_46, %c0_47] : memref<8x32xf32, #tpu.memory_space<vmem>>, vector<8x32xf32>
    tpu.vector_store %arg18[%c0_46, %c0_47], %87 {strides = array<i32>} : memref<8x32xf32, #tpu.memory_space<vmem>>, vector<8x32xf32>,
    %c3_i32 = arith.constant 3 : i32
    %89 = arith.cmpi eq, %arg2, %c3_i32 : i32
    %90 = arith.extui %89 : i1 to i32
    %c0_i32_48 = arith.constant 0 : i32
    %91 = arith.cmpi ne, %90, %c0_i32_48 : i32
    scf.if %91 {
      %c0_49 = arith.constant 0 : index
      %c0_50 = arith.constant 0 : index
      %92 = vector.load %arg18[%c0_49, %c0_50] : memref<8x32xf32, #tpu.memory_space<vmem>>, vector<8x32xf32>
      %93 = arith.addf %22, %92 : vector<8x32xf32>
      %c0_51 = arith.constant 0 : index
      %c0_52 = arith.constant 0 : index
      %94 = vector.load %arg12[%c0_51, %c0_52] : memref<1x32xf32, #tpu.memory_space<vmem>>, vector<1x32xf32>
      %95 = vector.broadcast %94 : vector<1x32xf32> to vector<8x32xf32>
      %96 = arith.addf %93, %95 : vector<8x32xf32>
      %cst_53 = arith.constant dense<0.000000e+00> : vector<8xf32>
      %97 = vector.multi_reduction <add>, %96, %cst_53 [1] : vector<8x32xf32> to vector<8xf32>
      %98 = vector.shape_cast %97 : vector<8xf32> to vector<8x1xf32>
      %cst_54 = arith.constant 3.200000e+01 : f32
      %99 = vector.broadcast %cst_54 : f32 to vector<8x1xf32>
      %100 = arith.divf %98, %99 : vector<8x1xf32>
      %101 = vector.broadcast %100 : vector<8x1xf32> to vector<8x32xf32>
      %102 = arith.subf %96, %101 : vector<8x32xf32>
      %103 = arith.mulf %102, %102 : vector<8x32xf32>
      %cst_55 = arith.constant dense<0.000000e+00> : vector<8xf32>
      %104 = vector.multi_reduction <add>, %103, %cst_55 [1] : vector<8x32xf32> to vector<8xf32>
      %105 = vector.shape_cast %104 : vector<8xf32> to vector<8x1xf32>
      %cst_56 = arith.constant 3.200000e+01 : f32
      %106 = vector.broadcast %cst_56 : f32 to vector<8x1xf32>
      %107 = arith.divf %105, %106 : vector<8x1xf32>
      %108 = vector.broadcast %100 : vector<8x1xf32> to vector<8x32xf32>
      %109 = arith.subf %96, %108 : vector<8x32xf32>
      %cst_57 = arith.constant 9.99999997E-7 : f32
      %110 = vector.broadcast %cst_57 : f32 to vector<8x1xf32>
      %111 = arith.addf %107, %110 : vector<8x1xf32>
      %112 = math.rsqrt %111 : vector<8x1xf32>
      %113 = vector.broadcast %112 : vector<8x1xf32> to vector<8x32xf32>
      %114 = arith.mulf %109, %113 : vector<8x32xf32>
      %115 = arith.truncf %114 : vector<8x32xf32> to vector<8x32xbf16>
      %c0_58 = arith.constant 0 : index
      %c0_59 = arith.constant 0 : index
      %116 = vector.load %arg13[%c0_58, %c0_59] : memref<32x128xbf16, #tpu.memory_space<vmem>>, vector<32x128xbf16>
      %cst_60 = arith.constant dense<0.000000e+00> : vector<8x128xf32>
      %117 = tpu.matmul %115, %116, %cst_60 {dimension_numbers = #tpu.dot_dimension_numbers<[1], [0], [0], [1], [0, 0, 1, 1], [], []>} : vector<8x32xbf16>, vector<32x128xbf16>, vector<8x128xf32> -> vector<8x128xf32>
      %c0_61 = arith.constant 0 : index
      %c0_62 = arith.constant 0 : index
      %118 = vector.load %arg14[%c0_61, %c0_62] : memref<1x128xf32, #tpu.memory_space<vmem>>, vector<1x128xf32>
      %119 = vector.broadcast %118 : vector<1x128xf32> to vector<8x128xf32>
      %120 = arith.addf %117, %119 : vector<8x128xf32>
      %cst_63 = arith.constant 5.000000e-01 : f32
      %121 = vector.broadcast %cst_63 : f32 to vector<8x128xf32>
      %122 = arith.mulf %121, %120 : vector<8x128xf32>
      %cst_64 = arith.constant 0.707106769 : f32
      %123 = vector.broadcast %cst_64 : f32 to vector<8x128xf32>
      %124 = arith.mulf %120, %123 : vector<8x128xf32>
      %125 = math.erf %124 : vector<8x128xf32>
      %cst_65 = arith.constant 1.000000e+00 : f32
      %126 = vector.broadcast %cst_65 : f32 to vector<8x128xf32>
      %127 = arith.addf %126, %125 : vector<8x128xf32>
      %128 = arith.mulf %122, %127 : vector<8x128xf32>
      %129 = arith.truncf %128 : vector<8x128xf32> to vector<8x128xbf16>
      %c0_66 = arith.constant 0 : index
      %c0_67 = arith.constant 0 : index
      %130 = vector.load %arg15[%c0_66, %c0_67] : memref<128x32xbf16, #tpu.memory_space<vmem>>, vector<128x32xbf16>
      %cst_68 = arith.constant dense<0.000000e+00> : vector<8x32xf32>
      %131 = tpu.matmul %129, %130, %cst_68 {dimension_numbers = #tpu.dot_dimension_numbers<[1], [0], [0], [1], [0, 0, 1, 1], [], []>} : vector<8x128xbf16>, vector<128x32xbf16>, vector<8x32xf32> -> vector<8x32xf32>
      %c0_69 = arith.constant 0 : index
      %c0_70 = arith.constant 0 : index
      %132 = vector.load %arg16[%c0_69, %c0_70] : memref<1x32xf32, #tpu.memory_space<vmem>>, vector<1x32xf32>
      %133 = vector.broadcast %132 : vector<1x32xf32> to vector<8x32xf32>
      %134 = arith.addf %131, %133 : vector<8x32xf32>
      %135 = arith.addf %96, %134 : vector<8x32xf32>
      %c0_71 = arith.constant 0 : index
      %c0_72 = arith.constant 0 : index
      %c0_73 = arith.constant 0 : index
      %136 = vector.load %arg17[%c0_71, %c0_72, %c0_73] : memref<1x8x32xf32, #tpu.memory_space<vmem>>, vector<1x8x32xf32>
      %137 = vector.shape_cast %136 : vector<1x8x32xf32> to vector<8x32xf32>
      %138 = vector.shape_cast %135 : vector<8x32xf32> to vector<1x8x32xf32>
      tpu.vector_store %arg17[%c0_71, %c0_72, %c0_73], %138 {strides = array<i32>} : memref<1x8x32xf32, #tpu.memory_space<vmem>>, vector<1x8x32xf32>,
    } else {
    }
    return
  }
  func.func @transform_0(%arg0: i32, %arg1: i32, %arg2: i32) -> (i32, i32, i32) {
    %c0_i32 = arith.constant 0 : i32
    %c0_i32_0 = arith.constant 0 : i32
    return %arg0, %arg1, %c0_i32 : i32, i32, i32
  }
  func.func @transform_1(%arg0: i32, %arg1: i32, %arg2: i32) -> (i32, i32, i32) {
    %c0_i32 = arith.constant 0 : i32
    %c0_i32_0 = arith.constant 0 : i32
    %c0_i32_1 = arith.constant 0 : i32
    return %arg0, %c0_i32, %c0_i32_0 : i32, i32, i32
  }
  func.func @transform_2(%arg0: i32, %arg1: i32, %arg2: i32) -> (i32, i32, i32) {
    %c0_i32 = arith.constant 0 : i32
    %c0_i32_0 = arith.constant 0 : i32
    %c0_i32_1 = arith.constant 0 : i32
    return %arg2, %c0_i32, %c0_i32_0 : i32, i32, i32
  }
  func.func @transform_3(%arg0: i32, %arg1: i32, %arg2: i32) -> (i32, i32, i32) {
    %c0_i32 = arith.constant 0 : i32
    %c0_i32_0 = arith.constant 0 : i32
    %c0_i32_1 = arith.constant 0 : i32
    return %arg2, %c0_i32, %c0_i32_0 : i32, i32, i32
  }
  func.func @transform_4(%arg0: i32, %arg1: i32, %arg2: i32) -> (i32, i32, i32) {
    %c0_i32 = arith.constant 0 : i32
    %c0_i32_0 = arith.constant 0 : i32
    %c0_i32_1 = arith.constant 0 : i32
    return %arg2, %c0_i32, %c0_i32_0 : i32, i32, i32
  }
  func.func @transform_5(%arg0: i32, %arg1: i32, %arg2: i32) -> (i32, i32, i32) {
    %c0_i32 = arith.constant 0 : i32
    %c0_i32_0 = arith.constant 0 : i32
    %c0_i32_1 = arith.constant 0 : i32
    return %arg2, %c0_i32, %c0_i32_0 : i32, i32, i32
  }
  func.func @transform_6(%arg0: i32, %arg1: i32, %arg2: i32) -> (i32, i32, i32) {
    %c0_i32 = arith.constant 0 : i32
    %c0_i32_0 = arith.constant 0 : i32
    %c0_i32_1 = arith.constant 0 : i32
    return %arg2, %c0_i32, %c0_i32_0 : i32, i32, i32
  }
  func.func @transform_7(%arg0: i32, %arg1: i32, %arg2: i32) -> (i32, i32, i32) {
    %c0_i32 = arith.constant 0 : i32
    %c0_i32_0 = arith.constant 0 : i32
    %c0_i32_1 = arith.constant 0 : i32
    return %arg2, %c0_i32, %c0_i32_0 : i32, i32, i32
  }
  func.func @transform_8(%arg0: i32, %arg1: i32, %arg2: i32) -> (i32, i32, i32) {
    %c0_i32 = arith.constant 0 : i32
    %c0_i32_0 = arith.constant 0 : i32
    %c0_i32_1 = arith.constant 0 : i32
    return %arg2, %c0_i32, %c0_i32_0 : i32, i32, i32
  }
  func.func @transform_9(%arg0: i32, %arg1: i32, %arg2: i32) -> (i32, i32) {
    %c0_i32 = arith.constant 0 : i32
    %c0_i32_0 = arith.constant 0 : i32
    %c0_i32_1 = arith.constant 0 : i32
    return %c0_i32, %c0_i32_0 : i32, i32
  }
  func.func @transform_10(%arg0: i32, %arg1: i32, %arg2: i32) -> (i32, i32) {
    %c0_i32 = arith.constant 0 : i32
    %c0_i32_0 = arith.constant 0 : i32
    %c0_i32_1 = arith.constant 0 : i32
    return %c0_i32, %c0_i32_0 : i32, i32
  }
  func.func @transform_11(%arg0: i32, %arg1: i32, %arg2: i32) -> (i32, i32) {
    %c0_i32 = arith.constant 0 : i32
    %c0_i32_0 = arith.constant 0 : i32
    %c0_i32_1 = arith.constant 0 : i32
    return %c0_i32, %c0_i32_0 : i32, i32
  }
  func.func @transform_12(%arg0: i32, %arg1: i32, %arg2: i32) -> (i32, i32) {
    %c0_i32 = arith.constant 0 : i32
    %c0_i32_0 = arith.constant 0 : i32
    %c0_i32_1 = arith.constant 0 : i32
    return %c0_i32, %c0_i32_0 : i32, i32
  }
  func.func @transform_13(%arg0: i32, %arg1: i32, %arg2: i32) -> (i32, i32) {
    %c0_i32 = arith.constant 0 : i32
    %c0_i32_0 = arith.constant 0 : i32
    %c0_i32_1 = arith.constant 0 : i32
    return %c0_i32, %c0_i32_0 : i32, i32
  }
  func.func @transform_14(%arg0: i32, %arg1: i32, %arg2: i32) -> (i32, i32, i32) {
    %c0_i32 = arith.constant 0 : i32
    %c0_i32_0 = arith.constant 0 : i32
    return %arg0, %arg1, %c0_i32 : i32, i32, i32
  }
}

</mosaic_0001>

<llo_original>
// kernel: tpu_custom_call.1
$region0: #{tpu_custom_call.1}
  #allocation0 [shape = 'u32[]', space=smem, size = 0x4, offset = 0x4, fixed_abs, tag = 'smem constant byte address 0x4 - core index']
  #allocation1 [shape = 'u32[144,128]{1,0:T(1,128)}', space=vmem, size = 0x12000, scoped, tag = 'internal scratch']
  #allocation2 [shape = 'f32[8,32]{1,0:T(8,128)}', space=vmem, size = 0x1000, scoped, tag = 'scratch operand']
  %s0 = inlined_call_operand.vmem [shape: f32[2,8,32], index: 0, kind: input, shape index: {}]
  %s1 = inlined_call_operand.vmem [shape: f32[2,8,32], index: 1, kind: input, shape index: {}]
  %s2 = inlined_call_operand.vmem [shape: bf16[4,32,8], index: 2, kind: input, shape index: {}]
  %s3 = inlined_call_operand.vmem [shape: f32[4,1,8], index: 3, kind: input, shape index: {}]
  %s4 = inlined_call_operand.vmem [shape: bf16[4,32,8], index: 4, kind: input, shape index: {}]
  %s5 = inlined_call_operand.vmem [shape: f32[4,1,8], index: 5, kind: input, shape index: {}]
  %s6 = inlined_call_operand.vmem [shape: bf16[4,32,8], index: 6, kind: input, shape index: {}]
  %s7 = inlined_call_operand.vmem [shape: f32[4,1,8], index: 7, kind: input, shape index: {}]
  %s8 = inlined_call_operand.vmem [shape: bf16[4,8,32], index: 8, kind: input, shape index: {}]
  %s9 = inlined_call_operand.vmem [shape: f32[1,32], index: 9, kind: input, shape index: {}]
  %s10 = inlined_call_operand.vmem [shape: bf16[32,128], index: 10, kind: input, shape index: {}]
  %s11 = inlined_call_operand.vmem [shape: f32[1,128], index: 11, kind: input, shape index: {}]
  %s12 = inlined_call_operand.vmem [shape: bf16[128,32], index: 12, kind: input, shape index: {}]
  %s13 = inlined_call_operand.vmem [shape: f32[1,32], index: 13, kind: input, shape index: {}]
  %s14 = inlined_call_operand.hbm [shape: f32[2,8,32], index: 14, kind: output, shape index: {}]
  %s15 = sld [smem:[#allocation0]]
  $region97: #{tpu_custom_call.1} parent=0
    _
  %s17 = ssub.s32 1, %s15
  %s18 = scalar_select 0, %s17, %s15
  $region1: #{tpu_custom_call.1} parent=0
    #allocation3 [shape = 'u8[8192]{0}', space=vmem, size = 0x2000, scoped, tag = 'output window, operand 0']
    #allocation4 [shape = 's32[2]{0}', space=sflag, size = 0x8, scoped, tag = 'scoped memory for tpu_custom_call.1']
    %19 = vsyncpa [#allocation4], 0
    %s20 = scalar_lea.sflag [#allocation4], 1
    %21 = vsyncpa %s20, 0
    loop: start=0, step=1, limit=10
    $region2: #{tpu_custom_call.1} parent=1 // loop_pre_header
      _
    $region3: #{tpu_custom_call.1} parent=1 // loop_header
      %s23 = sphi 0, %s27
      %p24 = scmp.ge.s32.totalorder %s23, 10
      %s30 = sphi 0, %s49
      %s31 = sphi 0, %s45
      %s32 = sphi 0, %s41
      %s33 = sphi 0, %s30
      %s34 = sphi 0, %s31
      %s35 = sphi 0, %s32
      %s36 = sphi 0, %s33
      %s37 = sphi 0, %s34
      %s38 = sphi 0, %s35
      %s54 = sphi 0, %s56
      %s57 = sphi 0, %s54
      %s58 = sphi 0, %s57
      %s74 = sphi 0, %s58
      %s80 = sphi 0, %s82
      %s83 = sphi 0, %s80
      %s84 = sphi 0, %s83
      %s100 = sphi 0, %s84
      %s106 = sphi 0, %s108
      %s109 = sphi 0, %s106
      %s110 = sphi 0, %s109
      %s126 = sphi 0, %s110
      %s132 = sphi 0, %s134
      %s135 = sphi 0, %s132
      %s136 = sphi 0, %s135
      %s152 = sphi 0, %s136
      %s158 = sphi 0, %s160
      %s161 = sphi 0, %s158
      %s162 = sphi 0, %s161
      %s178 = sphi 0, %s162
      %s184 = sphi 0, %s186
      %s187 = sphi 0, %s184
      %s188 = sphi 0, %s187
      %s204 = sphi 0, %s188
      %s210 = sphi 0, %s212
      %s213 = sphi 0, %s210
      %s214 = sphi 0, %s213
      %s230 = sphi 0, %s214
      %s236 = sphi 0, %s238
      %s239 = sphi 0, %s236
      %s240 = sphi 0, %s239
      %s256 = sphi 0, %s240
      %s262 = sphi 0, %s264
      %s265 = sphi 0, %s262
      %s266 = sphi 0, %s265
      %s282 = sphi 0, %s266
      %s286 = sphi 0, %s286
      %s288 = sphi 0, %s286
      %s289 = sphi 0, %s288
      %s303 = sphi 0, %s289
      %s307 = sphi 0, %s307
      %s309 = sphi 0, %s307
      %s310 = sphi 0, %s309
      %s324 = sphi 0, %s310
      %s328 = sphi 0, %s328
      %s330 = sphi 0, %s328
      %s331 = sphi 0, %s330
      %s345 = sphi 0, %s331
      %s349 = sphi 0, %s349
      %s351 = sphi 0, %s349
      %s352 = sphi 0, %s351
      %s366 = sphi 0, %s352
      %s370 = sphi 0, %s370
      %s372 = sphi 0, %s370
      %s373 = sphi 0, %s372
      %s387 = sphi 0, %s373
      %s395 = sphi 0, %s397
      %s398 = sphi 0, %s395
      %s399 = sphi 0, %s398
      %s415 = sphi 0, %s399
    $region4: #{tpu_custom_call.1} parent=1 // loop_header_branch
      %26 = sbr.rel (%p24) target = $region8
    $region5: #{tpu_custom_call.1} parent=1 // loop_body
      %s28 = ssub.s32 %s23, 1
      %s29 = ssub.s32 %s23, 2
      %s39 = sadd.s32 1, %s32
      %p40 = scmp.ge.s32.totalorder %s39, 4
      %s41 = scalar_select %p40, 0, %s39
      %s42 = sadd.s32 1, %s31
      %s43 = scalar_select %p40, %s42, %s31
      %p44 = scmp.ge.s32.totalorder %s43, 1
      %s45 = scalar_select %p44, 0, %s43
      %s46 = sadd.s32 1, %s30
      %s47 = scalar_select %p44, %s46, %s30
      %p48 = scmp.ge.s32.totalorder %s47, 2
      %s49 = scalar_select %p48, 0, %s47
      %s50 = ssub.s32 %s30, %s49
      %s51 = ssub.s32 %s31, %s45
      %s52 = sor.u32 %s50, %s51
      %p53 = scmp.eq.s32.totalorder %s52, 0
      %s55 = sadd.s32 %s54, 1
      %s56 = scalar_select %p53, %s54, %s55
      %p59 = pneg %p53
      %p60 = scmp.eq.s32.totalorder %s23, 7
      %p61 = por %p59, %p60
      %p62 = scmp.ne.s32.totalorder %s54, %s57
      %p63 = scmp.eq.s32.totalorder %s23, 0
      %p64 = por %p62, %p63
      %p65 = scmp.ne.s32.totalorder %s54, %s57
      %p66 = scmp.eq.s32.totalorder %s28, 7
      %p67 = por %p65, %p66
      %p68 = scmp.ne.s32.totalorder %s57, %s58
      %p69 = scmp.eq.s32.totalorder %s28, 0
      %p70 = por %p68, %p69
      %p71 = scmp.ne.s32.totalorder %s57, %s58
      %p72 = scmp.eq.s32.totalorder %s29, 7
      %p73 = por %p71, %p72
      %p75 = scmp.ne.s32.totalorder %s58, %s74
      %p76 = scmp.eq.s32.totalorder %s29, 0
      %p77 = por %p75, %p76
      %s78 = ssub.s32 %s30, %s49
      %p79 = scmp.eq.s32.totalorder %s78, 0
      %s81 = sadd.s32 %s80, 1
      %s82 = scalar_select %p79, %s80, %s81
      %p85 = pneg %p79
      %p86 = scmp.eq.s32.totalorder %s23, 7
      %p87 = por %p85, %p86
      %p88 = scmp.ne.s32.totalorder %s80, %s83
      %p89 = scmp.eq.s32.totalorder %s23, 0
      %p90 = por %p88, %p89
      %p91 = scmp.ne.s32.totalorder %s80, %s83
      %p92 = scmp.eq.s32.totalorder %s28, 7
      %p93 = por %p91, %p92
      %p94 = scmp.ne.s32.totalorder %s83, %s84
      %p95 = scmp.eq.s32.totalorder %s28, 0
      %p96 = por %p94, %p95
      %p97 = scmp.ne.s32.totalorder %s83, %s84
      %p98 = scmp.eq.s32.totalorder %s29, 7
      %p99 = por %p97, %p98
      %p101 = scmp.ne.s32.totalorder %s84, %s100
      %p102 = scmp.eq.s32.totalorder %s29, 0
      %p103 = por %p101, %p102
      %s104 = ssub.s32 %s32, %s41
      %p105 = scmp.eq.s32.totalorder %s104, 0
      %s107 = sadd.s32 %s106, 1
      %s108 = scalar_select %p105, %s106, %s107
      %p111 = pneg %p105
      %p112 = scmp.eq.s32.totalorder %s23, 7
      %p113 = por %p111, %p112
      %p114 = scmp.ne.s32.totalorder %s106, %s109
      %p115 = scmp.eq.s32.totalorder %s23, 0
      %p116 = por %p114, %p115
      %p117 = scmp.ne.s32.totalorder %s106, %s109
      %p118 = scmp.eq.s32.totalorder %s28, 7
      %p119 = por %p117, %p118
      %p120 = scmp.ne.s32.totalorder %s109, %s110
      %p121 = scmp.eq.s32.totalorder %s28, 0
      %p122 = por %p120, %p121
      %p123 = scmp.ne.s32.totalorder %s109, %s110
      %p124 = scmp.eq.s32.totalorder %s29, 7
      %p125 = por %p123, %p124
      %p127 = scmp.ne.s32.totalorder %s110, %s126
      %p128 = scmp.eq.s32.totalorder %s29, 0
      %p129 = por %p127, %p128
      %s130 = ssub.s32 %s32, %s41
      %p131 = scmp.eq.s32.totalorder %s130, 0
      %s133 = sadd.s32 %s132, 1
      %s134 = scalar_select %p131, %s132, %s133
      %p137 = pneg %p131
      %p138 = scmp.eq.s32.totalorder %s23, 7
      %p139 = por %p137, %p138
      %p140 = scmp.ne.s32.totalorder %s132, %s135
      %p141 = scmp.eq.s32.totalorder %s23, 0
      %p142 = por %p140, %p141
      %p143 = scmp.ne.s32.totalorder %s132, %s135
      %p144 = scmp.eq.s32.totalorder %s28, 7
      %p145 = por %p143, %p144
      %p146 = scmp.ne.s32.totalorder %s135, %s136
      %p147 = scmp.eq.s32.totalorder %s28, 0
      %p148 = por %p146, %p147
      %p149 = scmp.ne.s32.totalorder %s135, %s136
      %p150 = scmp.eq.s32.totalorder %s29, 7
      %p151 = por %p149, %p150
      %p153 = scmp.ne.s32.totalorder %s136, %s152
      %p154 = scmp.eq.s32.totalorder %s29, 0
      %p155 = por %p153, %p154
      %s156 = ssub.s32 %s32, %s41
      %p157 = scmp.eq.s32.totalorder %s156, 0
      %s159 = sadd.s32 %s158, 1
      %s160 = scalar_select %p157, %s158, %s159
      %p163 = pneg %p157
      %p164 = scmp.eq.s32.totalorder %s23, 7
      %p165 = por %p163, %p164
      %p166 = scmp.ne.s32.totalorder %s158, %s161
      %p167 = scmp.eq.s32.totalorder %s23, 0
      %p168 = por %p166, %p167
      %p169 = scmp.ne.s32.totalorder %s158, %s161
      %p170 = scmp.eq.s32.totalorder %s28, 7
      %p171 = por %p169, %p170
      %p172 = scmp.ne.s32.totalorder %s161, %s162
      %p173 = scmp.eq.s32.totalorder %s28, 0
      %p174 = por %p172, %p173
      %p175 = scmp.ne.s32.totalorder %s161, %s162
      %p176 = scmp.eq.s32.totalorder %s29, 7
      %p177 = por %p175, %p176
      %p179 = scmp.ne.s32.totalorder %s162, %s178
      %p180 = scmp.eq.s32.totalorder %s29, 0
      %p181 = por %p179, %p180
      %s182 = ssub.s32 %s32, %s41
      %p183 = scmp.eq.s32.totalorder %s182, 0
      %s185 = sadd.s32 %s184, 1
      %s186 = scalar_select %p183, %s184, %s185
      %p189 = pneg %p183
      %p190 = scmp.eq.s32.totalorder %s23, 7
      %p191 = por %p189, %p190
      %p192 = scmp.ne.s32.totalorder %s184, %s187
      %p193 = scmp.eq.s32.totalorder %s23, 0
      %p194 = por %p192, %p193
      %p195 = scmp.ne.s32.totalorder %s184, %s187
      %p196 = scmp.eq.s32.totalorder %s28, 7
      %p197 = por %p195, %p196
      %p198 = scmp.ne.s32.totalorder %s187, %s188
      %p199 = scmp.eq.s32.totalorder %s28, 0
      %p200 = por %p198, %p199
      %p201 = scmp.ne.s32.totalorder %s187, %s188
      %p202 = scmp.eq.s32.totalorder %s29, 7
      %p203 = por %p201, %p202
      %p205 = scmp.ne.s32.totalorder %s188, %s204
      %p206 = scmp.eq.s32.totalorder %s29, 0
      %p207 = por %p205, %p206
      %s208 = ssub.s32 %s32, %s41
      %p209 = scmp.eq.s32.totalorder %s208, 0
      %s211 = sadd.s32 %s210, 1
      %s212 = scalar_select %p209, %s210, %s211
      %p215 = pneg %p209
      %p216 = scmp.eq.s32.totalorder %s23, 7
      %p217 = por %p215, %p216
      %p218 = scmp.ne.s32.totalorder %s210, %s213
      %p219 = scmp.eq.s32.totalorder %s23, 0
      %p220 = por %p218, %p219
      %p221 = scmp.ne.s32.totalorder %s210, %s213
      %p222 = scmp.eq.s32.totalorder %s28, 7
      %p223 = por %p221, %p222
      %p224 = scmp.ne.s32.totalorder %s213, %s214
      %p225 = scmp.eq.s32.totalorder %s28, 0
      %p226 = por %p224, %p225
      %p227 = scmp.ne.s32.totalorder %s213, %s214
      %p228 = scmp.eq.s32.totalorder %s29, 7
      %p229 = por %p227, %p228
      %p231 = scmp.ne.s32.totalorder %s214, %s230
      %p232 = scmp.eq.s32.totalorder %s29, 0
      %p233 = por %p231, %p232
      %s234 = ssub.s32 %s32, %s41
      %p235 = scmp.eq.s32.totalorder %s234, 0
      %s237 = sadd.s32 %s236, 1
      %s238 = scalar_select %p235, %s236, %s237
      %p241 = pneg %p235
      %p242 = scmp.eq.s32.totalorder %s23, 7
      %p243 = por %p241, %p242
      %p244 = scmp.ne.s32.totalorder %s236, %s239
      %p245 = scmp.eq.s32.totalorder %s23, 0
      %p246 = por %p244, %p245
      %p247 = scmp.ne.s32.totalorder %s236, %s239
      %p248 = scmp.eq.s32.totalorder %s28, 7
      %p249 = por %p247, %p248
      %p250 = scmp.ne.s32.totalorder %s239, %s240
      %p251 = scmp.eq.s32.totalorder %s28, 0
      %p252 = por %p250, %p251
      %p253 = scmp.ne.s32.totalorder %s239, %s240
      %p254 = scmp.eq.s32.totalorder %s29, 7
      %p255 = por %p253, %p254
      %p257 = scmp.ne.s32.totalorder %s240, %s256
      %p258 = scmp.eq.s32.totalorder %s29, 0
      %p259 = por %p257, %p258
      %s260 = ssub.s32 %s32, %s41
      %p261 = scmp.eq.s32.totalorder %s260, 0
      %s263 = sadd.s32 %s262, 1
      %s264 = scalar_select %p261, %s262, %s263
      %p267 = pneg %p261
      %p268 = scmp.eq.s32.totalorder %s23, 7
      %p269 = por %p267, %p268
      %p270 = scmp.ne.s32.totalorder %s262, %s265
      %p271 = scmp.eq.s32.totalorder %s23, 0
      %p272 = por %p270, %p271
      %p273 = scmp.ne.s32.totalorder %s262, %s265
      %p274 = scmp.eq.s32.totalorder %s28, 7
      %p275 = por %p273, %p274
      %p276 = scmp.ne.s32.totalorder %s265, %s266
      %p277 = scmp.eq.s32.totalorder %s28, 0
      %p278 = por %p276, %p277
      %p279 = scmp.ne.s32.totalorder %s265, %s266
      %p280 = scmp.eq.s32.totalorder %s29, 7
      %p281 = por %p279, %p280
      %p283 = scmp.ne.s32.totalorder %s266, %s282
      %p284 = scmp.eq.s32.totalorder %s29, 0
      %p285 = por %p283, %p284
      %s287 = sadd.s32 %s286, 1
      %p290 = scmp.eq.s32.totalorder %s23, 7
      %p291 = scmp.ne.s32.totalorder %s286, %s288
      %p292 = scmp.eq.s32.totalorder %s23, 0
      %p293 = por %p291, %p292
      %p294 = scmp.ne.s32.totalorder %s286, %s288
      %p295 = scmp.eq.s32.totalorder %s28, 7
      %p296 = por %p294, %p295
      %p297 = scmp.ne.s32.totalorder %s288, %s289
      %p298 = scmp.eq.s32.totalorder %s28, 0
      %p299 = por %p297, %p298
      %p300 = scmp.ne.s32.totalorder %s288, %s289
      %p301 = scmp.eq.s32.totalorder %s29, 7
      %p302 = por %p300, %p301
      %p304 = scmp.ne.s32.totalorder %s289, %s303
      %p305 = scmp.eq.s32.totalorder %s29, 0
      %p306 = por %p304, %p305
      %s308 = sadd.s32 %s307, 1
      %p311 = scmp.eq.s32.totalorder %s23, 7
      %p312 = scmp.ne.s32.totalorder %s307, %s309
      %p313 = scmp.eq.s32.totalorder %s23, 0
      %p314 = por %p312, %p313
      %p315 = scmp.ne.s32.totalorder %s307, %s309
      %p316 = scmp.eq.s32.totalorder %s28, 7
      %p317 = por %p315, %p316
      %p318 = scmp.ne.s32.totalorder %s309, %s310
      %p319 = scmp.eq.s32.totalorder %s28, 0
      %p320 = por %p318, %p319
      %p321 = scmp.ne.s32.totalorder %s309, %s310
      %p322 = scmp.eq.s32.totalorder %s29, 7
      %p323 = por %p321, %p322
      %p325 = scmp.ne.s32.totalorder %s310, %s324
      %p326 = scmp.eq.s32.totalorder %s29, 0
      %p327 = por %p325, %p326
      %s329 = sadd.s32 %s328, 1
      %p332 = scmp.eq.s32.totalorder %s23, 7
      %p333 = scmp.ne.s32.totalorder %s328, %s330
      %p334 = scmp.eq.s32.totalorder %s23, 0
      %p335 = por %p333, %p334
      %p336 = scmp.ne.s32.totalorder %s328, %s330
      %p337 = scmp.eq.s32.totalorder %s28, 7
      %p338 = por %p336, %p337
      %p339 = scmp.ne.s32.totalorder %s330, %s331
      %p340 = scmp.eq.s32.totalorder %s28, 0
      %p341 = por %p339, %p340
      %p342 = scmp.ne.s32.totalorder %s330, %s331
      %p343 = scmp.eq.s32.totalorder %s29, 7
      %p344 = por %p342, %p343
      %p346 = scmp.ne.s32.totalorder %s331, %s345
      %p347 = scmp.eq.s32.totalorder %s29, 0
      %p348 = por %p346, %p347
      %s350 = sadd.s32 %s349, 1
      %p353 = scmp.eq.s32.totalorder %s23, 7
      %p354 = scmp.ne.s32.totalorder %s349, %s351
      %p355 = scmp.eq.s32.totalorder %s23, 0
      %p356 = por %p354, %p355
      %p357 = scmp.ne.s32.totalorder %s349, %s351
      %p358 = scmp.eq.s32.totalorder %s28, 7
      %p359 = por %p357, %p358
      %p360 = scmp.ne.s32.totalorder %s351, %s352
      %p361 = scmp.eq.s32.totalorder %s28, 0
      %p362 = por %p360, %p361
      %p363 = scmp.ne.s32.totalorder %s351, %s352
      %p364 = scmp.eq.s32.totalorder %s29, 7
      %p365 = por %p363, %p364
      %p367 = scmp.ne.s32.totalorder %s352, %s366
      %p368 = scmp.eq.s32.totalorder %s29, 0
      %p369 = por %p367, %p368
      %s371 = sadd.s32 %s370, 1
      %p374 = scmp.eq.s32.totalorder %s23, 7
      %p375 = scmp.ne.s32.totalorder %s370, %s372
      %p376 = scmp.eq.s32.totalorder %s23, 0
      %p377 = por %p375, %p376
      %p378 = scmp.ne.s32.totalorder %s370, %s372
      %p379 = scmp.eq.s32.totalorder %s28, 7
      %p380 = por %p378, %p379
      %p381 = scmp.ne.s32.totalorder %s372, %s373
      %p382 = scmp.eq.s32.totalorder %s28, 0
      %p383 = por %p381, %p382
      %p384 = scmp.ne.s32.totalorder %s372, %s373
      %p385 = scmp.eq.s32.totalorder %s29, 7
      %p386 = por %p384, %p385
      %p388 = scmp.ne.s32.totalorder %s373, %s387
      %p389 = scmp.eq.s32.totalorder %s29, 0
      %p390 = por %p388, %p389
      %s391 = ssub.s32 %s30, %s49
      %s392 = ssub.s32 %s31, %s45
      %s393 = sor.u32 %s391, %s392
      %p394 = scmp.eq.s32.totalorder %s393, 0
      %s396 = sadd.s32 %s395, 1
      %s397 = scalar_select %p394, %s395, %s396
      %p400 = pneg %p394
      %p401 = scmp.eq.s32.totalorder %s23, 7
      %p402 = por %p400, %p401
      %p403 = scmp.ne.s32.totalorder %s395, %s398
      %p404 = scmp.eq.s32.totalorder %s23, 0
      %p405 = por %p403, %p404
      %p406 = scmp.ne.s32.totalorder %s395, %s398
      %p407 = scmp.eq.s32.totalorder %s28, 7
      %p408 = por %p406, %p407
      %p409 = scmp.ne.s32.totalorder %s398, %s399
      %p410 = scmp.eq.s32.totalorder %s28, 0
      %p411 = por %p409, %p410
      %p412 = scmp.ne.s32.totalorder %s398, %s399
      %p413 = scmp.eq.s32.totalorder %s29, 7
      %p414 = por %p412, %p413
      %p416 = scmp.ne.s32.totalorder %s399, %s415
      %p417 = scmp.eq.s32.totalorder %s29, 0
      %p418 = por %p416, %p417
      %p419 = scmp.le.s32.totalorder 1, %s23
      %p420 = scmp.lt.s32.totalorder %s23, 9
      %p421 = pnand %p419, %p420
      %p422 = pneg %p421
      // Predicated region
      $region9: #{tpu_custom_call.1} parent=5 // pred_check
        _
      $region10: #{tpu_custom_call.1} parent=5 // pred_check_branch
        %424 = sbr.rel (%p421) target = $region12
      $region11: #{tpu_custom_call.1} parent=5 // pred_region
        %s425 = ssub.s32 %s23, 1
        // Predicated region
        $region13: #{tpu_custom_call.1} parent=11 // pred_check
          %p426 = pneg %p299
        $region14: #{tpu_custom_call.1} parent=11 // pred_check_branch
          %428 = sbr.rel (%p426) target = $region16
        $region15: #{tpu_custom_call.1} parent=11 // pred_region
          _
        $region16: #{tpu_custom_call.1} parent=11 // pred_fallthru
          _
        // Predicated region
        $region17: #{tpu_custom_call.1} parent=11 // pred_check
          %p429 = pneg %p320
        $region18: #{tpu_custom_call.1} parent=11 // pred_check_branch
          %431 = sbr.rel (%p429) target = $region20
        $region19: #{tpu_custom_call.1} parent=11 // pred_region
          _
        $region20: #{tpu_custom_call.1} parent=11 // pred_fallthru
          _
        // Predicated region
        $region21: #{tpu_custom_call.1} parent=11 // pred_check
          %p432 = pneg %p341
        $region22: #{tpu_custom_call.1} parent=11 // pred_check_branch
          %434 = sbr.rel (%p432) target = $region24
        $region23: #{tpu_custom_call.1} parent=11 // pred_region
          _
        $region24: #{tpu_custom_call.1} parent=11 // pred_fallthru
          _
        // Predicated region
        $region25: #{tpu_custom_call.1} parent=11 // pred_check
          %p435 = pneg %p362
        $region26: #{tpu_custom_call.1} parent=11 // pred_check_branch
          %437 = sbr.rel (%p435) target = $region28
        $region27: #{tpu_custom_call.1} parent=11 // pred_region
          _
        $region28: #{tpu_custom_call.1} parent=11 // pred_fallthru
          _
        // Predicated region
        $region29: #{tpu_custom_call.1} parent=11 // pred_check
          %p438 = pneg %p383
        $region30: #{tpu_custom_call.1} parent=11 // pred_check_branch
          %440 = sbr.rel (%p438) target = $region32
        $region31: #{tpu_custom_call.1} parent=11 // pred_region
          _
        $region32: #{tpu_custom_call.1} parent=11 // pred_fallthru
          _
      $region12: #{tpu_custom_call.1} parent=5 // pred_fallthru
        _
      %p441 = scmp.lt.s32.totalorder %s23, 8
      // Predicated region
      $region33: #{tpu_custom_call.1} parent=5 // pred_check
        %p442 = pneg %p441
      $region34: #{tpu_custom_call.1} parent=5 // pred_check_branch
        %444 = sbr.rel (%p442) target = $region36
      $region35: #{tpu_custom_call.1} parent=5 // pred_region
        // Predicated region
        $region37: #{tpu_custom_call.1} parent=35 // pred_check
          %p445 = pneg %p64
        $region38: #{tpu_custom_call.1} parent=35 // pred_check_branch
          %447 = sbr.rel (%p445) target = $region40
        $region39: #{tpu_custom_call.1} parent=35 // pred_region
          %p448 = scmp.lt.s32.totalorder %s30, 1
          %s449 = scalar_select %p448, %s30, 1
          %p450 = scmp.lt.s32.totalorder %s31, 0
          %s451 = scalar_select %p450, %s31, 0
          %s452 = sadd.s32 %s451, %s449
          %s453 = smul.addr %s452, 8
          %s454 = scalar_lea.vmem %s0, %s453
        $region40: #{tpu_custom_call.1} parent=35 // pred_fallthru
          _
        // Predicated region
        $region41: #{tpu_custom_call.1} parent=35 // pred_check
          %p455 = pneg %p90
        $region42: #{tpu_custom_call.1} parent=35 // pred_check_branch
          %457 = sbr.rel (%p455) target = $region44
        $region43: #{tpu_custom_call.1} parent=35 // pred_region
          %p458 = scmp.lt.s32.totalorder %s30, 1
          %s459 = scalar_select %p458, %s30, 1
          %s460 = smul.addr %s459, 8
          %s461 = scalar_lea.vmem %s1, %s460
        $region44: #{tpu_custom_call.1} parent=35 // pred_fallthru
          _
        // Predicated region
        $region45: #{tpu_custom_call.1} parent=35 // pred_check
          %p462 = pneg %p116
        $region46: #{tpu_custom_call.1} parent=35 // pred_check_branch
          %464 = sbr.rel (%p462) target = $region48
        $region47: #{tpu_custom_call.1} parent=35 // pred_region
          %p465 = scmp.lt.s32.totalorder %s32, 3
          %s466 = scalar_select %p465, %s32, 3
          %s467 = smul.addr %s466, 4
          %s468 = smul.addr %s467, 4
          %s469 = scalar_lea.vmem %s2, %s468
        $region48: #{tpu_custom_call.1} parent=35 // pred_fallthru
          _
        // Predicated region
        $region49: #{tpu_custom_call.1} parent=35 // pred_check
          %p470 = pneg %p142
        $region50: #{tpu_custom_call.1} parent=35 // pred_check_branch
          %472 = sbr.rel (%p470) target = $region52
        $region51: #{tpu_custom_call.1} parent=35 // pred_region
          %p473 = scmp.lt.s32.totalorder %s32, 3
          %s474 = scalar_select %p473, %s32, 3
          %s475 = scalar_lea.vmem %s3, %s474
        $region52: #{tpu_custom_call.1} parent=35 // pred_fallthru
          _
        // Predicated region
        $region53: #{tpu_custom_call.1} parent=35 // pred_check
          %p476 = pneg %p168
        $region54: #{tpu_custom_call.1} parent=35 // pred_check_branch
          %478 = sbr.rel (%p476) target = $region56
        $region55: #{tpu_custom_call.1} parent=35 // pred_region
          %p479 = scmp.lt.s32.totalorder %s32, 3
          %s480 = scalar_select %p479, %s32, 3
          %s481 = smul.addr %s480, 4
          %s482 = smul.addr %s481, 4
          %s483 = scalar_lea.vmem %s4, %s482
        $region56: #{tpu_custom_call.1} parent=35 // pred_fallthru
          _
        // Predicated region
        $region57: #{tpu_custom_call.1} parent=35 // pred_check
          %p484 = pneg %p194
        $region58: #{tpu_custom_call.1} parent=35 // pred_check_branch
          %486 = sbr.rel (%p484) target = $region60
        $region59: #{tpu_custom_call.1} parent=35 // pred_region
          %p487 = scmp.lt.s32.totalorder %s32, 3
          %s488 = scalar_select %p487, %s32, 3
          %s489 = scalar_lea.vmem %s5, %s488
        $region60: #{tpu_custom_call.1} parent=35 // pred_fallthru
          _
        // Predicated region
        $region61: #{tpu_custom_call.1} parent=35 // pred_check
          %p490 = pneg %p220
        $region62: #{tpu_custom_call.1} parent=35 // pred_check_branch
          %492 = sbr.rel (%p490) target = $region64
        $region63: #{tpu_custom_call.1} parent=35 // pred_region
          %p493 = scmp.lt.s32.totalorder %s32, 3
          %s494 = scalar_select %p493, %s32, 3
          %s495 = smul.addr %s494, 4
          %s496 = smul.addr %s495, 4
          %s497 = scalar_lea.vmem %s6, %s496
        $region64: #{tpu_custom_call.1} parent=35 // pred_fallthru
          _
        // Predicated region
        $region65: #{tpu_custom_call.1} parent=35 // pred_check
          %p498 = pneg %p246
        $region66: #{tpu_custom_call.1} parent=35 // pred_check_branch
          %500 = sbr.rel (%p498) target = $region68
        $region67: #{tpu_custom_call.1} parent=35 // pred_region
          %p501 = scmp.lt.s32.totalorder %s32, 3
          %s502 = scalar_select %p501, %s32, 3
          %s503 = scalar_lea.vmem %s7, %s502
        $region68: #{tpu_custom_call.1} parent=35 // pred_fallthru
          _
        // Predicated region
        $region69: #{tpu_custom_call.1} parent=35 // pred_check
          %p504 = pneg %p272
        $region70: #{tpu_custom_call.1} parent=35 // pred_check_branch
          %506 = sbr.rel (%p504) target = $region72
        $region71: #{tpu_custom_call.1} parent=35 // pred_region
          %p507 = scmp.lt.s32.totalorder %s32, 3
          %s508 = scalar_select %p507, %s32, 3
          %s509 = smul.addr %s508, 4
          %s510 = scalar_lea.vmem %s8, %s509
        $region72: #{tpu_custom_call.1} parent=35 // pred_fallthru
          _
      $region36: #{tpu_custom_call.1} parent=5 // pred_fallthru
        _
      %p511 = scmp.le.s32.totalorder 1, %s23
      %p512 = scmp.lt.s32.totalorder %s23, 9
      %p513 = pnand %p511, %p512
      %p514 = pneg %p513
      // Predicated region
      $region73: #{tpu_custom_call.1} parent=5 // pred_check
        _
      $region74: #{tpu_custom_call.1} parent=5 // pred_check_branch
        %516 = sbr.rel (%p513) target = $region76
      $region75: #{tpu_custom_call.1} parent=5 // pred_region
        %s517 = ssub.s32 %s23, 1
        %p518 = scmp.lt.s32.totalorder %s33, 1
        %s519 = scalar_select %p518, %s33, 1
        %p520 = scmp.lt.s32.totalorder %s34, 0
        %s521 = scalar_select %p520, %s34, 0
        %s522 = sadd.s32 %s521, %s519
        %s523 = smul.addr %s522, 8
        %s524 = scalar_lea.vmem %s0, %s523
        %p525 = pneg %p70
        %p526 = pneg %p67
        %p527 = scmp.lt.s32.totalorder %s33, 1
        %s528 = scalar_select %p527, %s33, 1
        %s529 = smul.addr %s528, 8
        %s530 = scalar_lea.vmem %s1, %s529
        %p531 = pneg %p96
        %p532 = pneg %p93
        %p533 = scmp.lt.s32.totalorder %s35, 3
        %s534 = scalar_select %p533, %s35, 3
        %s535 = smul.addr %s534, 4
        %s536 = smul.addr %s535, 4
        %s537 = scalar_lea.vmem %s2, %s536
        %p538 = pneg %p122
        %p539 = pneg %p119
        %p540 = scmp.lt.s32.totalorder %s35, 3
        %s541 = scalar_select %p540, %s35, 3
        %s542 = scalar_lea.vmem %s3, %s541
        %p543 = pneg %p148
        %p544 = pneg %p145
        %p545 = scmp.lt.s32.totalorder %s35, 3
        %s546 = scalar_select %p545, %s35, 3
        %s547 = smul.addr %s546, 4
        %s548 = smul.addr %s547, 4
        %s549 = scalar_lea.vmem %s4, %s548
        %p550 = pneg %p174
        %p551 = pneg %p171
        %p552 = scmp.lt.s32.totalorder %s35, 3
        %s553 = scalar_select %p552, %s35, 3
        %s554 = scalar_lea.vmem %s5, %s553
        %p555 = pneg %p200
        %p556 = pneg %p197
        %p557 = scmp.lt.s32.totalorder %s35, 3
        %s558 = scalar_select %p557, %s35, 3
        %s559 = smul.addr %s558, 4
        %s560 = smul.addr %s559, 4
        %s561 = scalar_lea.vmem %s6, %s560
        %p562 = pneg %p226
        %p563 = pneg %p223
        %p564 = scmp.lt.s32.totalorder %s35, 3
        %s565 = scalar_select %p564, %s35, 3
        %s566 = scalar_lea.vmem %s7, %s565
        %p567 = pneg %p252
        %p568 = pneg %p249
        %p569 = scmp.lt.s32.totalorder %s35, 3
        %s570 = scalar_select %p569, %s35, 3
        %s571 = smul.addr %s570, 4
        %s572 = scalar_lea.vmem %s8, %s571
        %p573 = pneg %p278
        %p574 = pneg %p275
        %p575 = pneg %p299
        %p576 = pneg %p296
        %p577 = pneg %p320
        %p578 = pneg %p317
        %p579 = pneg %p341
        %p580 = pneg %p338
        %p581 = pneg %p362
        %p582 = pneg %p359
        %p583 = pneg %p383
        %p584 = pneg %p380
        %p585 = pneg %p411
        %p586 = pneg %p408
        %s587 = sand.u32 %s398, 1
        %s588 = scalar_lea.sflag [#allocation4], %s587
        %s589 = sand.u32 %s398, 1
        %s590 = smul.addr %s589, 8
        %s591 = scalar_lea.vmem [#allocation3], %s590
        %p592 = scmp.lt.s32.totalorder %s33, 1
        %s593 = scalar_select %p592, %s33, 1
        %p594 = scmp.lt.s32.totalorder %s34, 0
        %s595 = scalar_select %p594, %s34, 0
        %s596 = sadd.s32 %s595, %s593
        %s597 = smul.addr %s596, 8
        %s598 = scalar_lea.vmem %s0, %s597
        %p599 = scmp.lt.s32.totalorder %s33, 1
        %s600 = scalar_select %p599, %s33, 1
        %s601 = smul.addr %s600, 8
        %s602 = scalar_lea.vmem %s1, %s601
        %p603 = scmp.lt.s32.totalorder %s35, 3
        %s604 = scalar_select %p603, %s35, 3
        %s605 = smul.addr %s604, 4
        %s606 = smul.addr %s605, 4
        %s607 = scalar_lea.vmem %s2, %s606
        %p608 = scmp.lt.s32.totalorder %s35, 3
        %s609 = scalar_select %p608, %s35, 3
        %s610 = scalar_lea.vmem %s3, %s609
        %p611 = scmp.lt.s32.totalorder %s35, 3
        %s612 = scalar_select %p611, %s35, 3
        %s613 = smul.addr %s612, 4
        %s614 = smul.addr %s613, 4
        %s615 = scalar_lea.vmem %s4, %s614
        %p616 = scmp.lt.s32.totalorder %s35, 3
        %s617 = scalar_select %p616, %s35, 3
        %s618 = scalar_lea.vmem %s5, %s617
        %p619 = scmp.lt.s32.totalorder %s35, 3
        %s620 = scalar_select %p619, %s35, 3
        %s621 = smul.addr %s620, 4
        %s622 = smul.addr %s621, 4
        %s623 = scalar_lea.vmem %s6, %s622
        %p624 = scmp.lt.s32.totalorder %s35, 3
        %s625 = scalar_select %p624, %s35, 3
        %s626 = scalar_lea.vmem %s7, %s625
        %p627 = scmp.lt.s32.totalorder %s35, 3
        %s628 = scalar_select %p627, %s35, 3
        %s629 = smul.addr %s628, 4
        %s630 = scalar_lea.vmem %s8, %s629
        %p632 = scmp.eq.s32.totalorder %s35, 0
        // Predicated region
        $region77: #{tpu_custom_call.1} parent=75 // pred_check
          %p633 = pneg %p632
        $region78: #{tpu_custom_call.1} parent=75 // pred_check_branch
          %635 = sbr.rel (%p633) target = $region80
        $region79: #{tpu_custom_call.1} parent=75 // pred_region
          %vm636 = vcmask 261120
          %637 = vst.msk [vmem:[#allocation2] sm:$0xff] %vm636, 0.0
        $region80: #{tpu_custom_call.1} parent=75 // pred_fallthru
          _
        %v638 = vld [vmem:[%s598] sm:$0xff]
        %vm639 = vcmask 261120
        %v640 = vsel %vm639, %v638, 0.0
        %641 = vadd.xlane.f32.xlu0 %v640
        %v642 = vpop.xlane.xlu0 %641
        %v643 = vrcp.pop 32.0
        %v644 = vmul.f32 %v642, %v643
        %v645 = vsub.f32 %v638, %v644
        %v646 = vmul.f32 %v645, %v645
        %v647 = vsel %vm639, %v646, 0.0
        %648 = vadd.xlane.f32.xlu0 %v647
        %v649 = vpop.xlane.xlu0 %648
        %v650 = vmul.f32 %v649, %v643
        %v651 = vadd.f32 %v650, 1e-06
        %v652 = vrsqrt.pop %v651
        %v653 = vmul.f32 %v645, %v652
        %v654 = vpack.c.bf16 %v653, %v653
        %v655 = vld [vmem:[%s602] sm:$0xff]
        %v656 = vsel %vm639, %v655, 0.0
        %657 = vadd.xlane.f32.xlu0 %v656
        %v658 = vpop.xlane.xlu0 %657
        %v659 = vmul.f32 %v658, %v643
        %v660 = vsub.f32 %v655, %v659
        %v661 = vmul.f32 %v660, %v660
        %v662 = vsel %vm639, %v661, 0.0
        %663 = vadd.xlane.f32.xlu0 %v662
        %v664 = vpop.xlane.xlu0 %663
        %v665 = vmul.f32 %v664, %v643
        %v666 = vadd.f32 %v665, 1e-06
        %v667 = vrsqrt.pop %v666
        %v668 = vmul.f32 %v660, %v667
        %v669 = vpack.c.bf16 %v668, %v668
        %v670 = vld [vmem:[%s607] sm:$0xf]
        %v671 = vld [vmem:[%s607 + $0x4] sm:$0xf]
        %v672 = vld [vmem:[%s607 + $0x8] sm:$0xf]
        %v673 = vld [vmem:[%s607 + $0xc] sm:$0xf]
        %v674 = vld [vmem:[%s610] sm:$0x1]
        %v676 = vlaneseq
        %v677 = vshrl.u32 %v676, 7
        %v678 = vsub.s32 0, %v677
        %v679 = vrot.slane %v674, %v678
        %v685 = vunpack.c.l.b16 %v670
        %v686 = vunpack.c.l.b16 %v671
        %v687 = vunpack.c.l.b16 %v672
        %v688 = vunpack.c.l.b16 %v673
        %v689 = vpack.c.b16 %v686, %v685
        %v690 = vpack.c.b16 %v688, %v687
        %v694 = vsel %vm639, %v654, 0
        %696 = vmatprep.subr.bf16.mxu0 0
        %697 = vmatpush1.bf16.msra.mxu0 0
        %698 = vmatprep.subr.bf16.mxu0 0
        %699 = vmatpush1.bf16.msra.mxu0 0
        %700 = vmatprep.subr.bf16.mxu0 0
        %701 = vmatpush1.bf16.msra.mxu0 0
        %702 = vmatprep.subr.bf16.mxu0 0
        %703 = vmatpush1.bf16.msra.mxu0 0
        %704 = vmatprep.subr.bf16.mxu0 0
        %705 = vmatpush1.bf16.msra.mxu0 0
        %706 = vmatprep.subr.bf16.mxu0 0
        %707 = vmatpush1.bf16.msra.mxu0 0
        %708 = vmatprep.subr.bf16.mxu0 0
        %709 = vmatpush1.bf16.msra.mxu0 %v690
        %710 = vmatprep.subr.bf16.mxu0 0
        %711 = vmatpush1.bf16.msra.mxu0 %v689
        %712 = vmatprep.subr.bf16.mxu0 0
        %713 = vmatpush2.bf16.msra.mxu0 0
        %714 = vmatprep.subr.bf16.mxu0 0
        %715 = vmatpush2.bf16.msra.mxu0 0
        %716 = vmatprep.subr.bf16.mxu0 0
        %717 = vmatpush2.bf16.msra.mxu0 0
        %718 = vmatprep.subr.bf16.mxu0 0
        %719 = vmatpush2.bf16.msra.mxu0 0
        %720 = vmatprep.subr.bf16.mxu0 0
        %721 = vmatpush2.bf16.msra.mxu0 0
        %722 = vmatprep.subr.bf16.mxu0 0
        %723 = vmatpush2.bf16.msra.mxu0 0
        %724 = vmatprep.subr.bf16.mxu0 0
        %725 = vmatpush2.bf16.msra.mxu0 0
        %726 = vmatprep.subr.bf16.mxu0 0
        %727 = vmatpush2.bf16.msra.mxu0 0
        %728 = vmatprep.mubr.bf16.mxu0 0
        %729 = vmatmul.mubr.bf16.gmra.mxu0 %v694
        %v730 = vpop.f32.mrf.mxu0
        %v731 = vadd.f32 %v679, %v730
        %v732 = vpop.f32.mrf.mxu0
        %v733 = vpop.f32.mrf.mxu0
        %v734 = vpop.f32.mrf.mxu0
        %735 = vdwg.mxu0
        %v736 = vld [vmem:[%s615] sm:$0xf]
        %v737 = vld [vmem:[%s615 + $0x4] sm:$0xf]
        %v738 = vld [vmem:[%s615 + $0x8] sm:$0xf]
        %v739 = vld [vmem:[%s615 + $0xc] sm:$0xf]
        %v740 = vld [vmem:[%s618] sm:$0x1]
        %v742 = vlaneseq
        %v743 = vshrl.u32 %v742, 7
        %v744 = vsub.s32 0, %v743
        %v745 = vrot.slane %v740, %v744
        %v751 = vunpack.c.l.b16 %v736
        %v752 = vunpack.c.l.b16 %v737
        %v753 = vunpack.c.l.b16 %v738
        %v754 = vunpack.c.l.b16 %v739
        %v755 = vpack.c.b16 %v752, %v751
        %v756 = vpack.c.b16 %v754, %v753
        %v760 = vsel %vm639, %v669, 0
        %762 = vmatprep.subr.bf16.mxu0 0
        %763 = vmatpush1.bf16.msra.mxu0 0
        %764 = vmatprep.subr.bf16.mxu0 0
        %765 = vmatpush1.bf16.msra.mxu0 0
        %766 = vmatprep.subr.bf16.mxu0 0
        %767 = vmatpush1.bf16.msra.mxu0 0
        %768 = vmatprep.subr.bf16.mxu0 0
        %769 = vmatpush1.bf16.msra.mxu0 0
        %770 = vmatprep.subr.bf16.mxu0 0
        %771 = vmatpush1.bf16.msra.mxu0 0
        %772 = vmatprep.subr.bf16.mxu0 0
        %773 = vmatpush1.bf16.msra.mxu0 0
        %774 = vmatprep.subr.bf16.mxu0 0
        %775 = vmatpush1.bf16.msra.mxu0 %v756
        %776 = vmatprep.subr.bf16.mxu0 0
        %777 = vmatpush1.bf16.msra.mxu0 %v755
        %778 = vmatprep.subr.bf16.mxu0 0
        %779 = vmatpush2.bf16.msra.mxu0 0
        %780 = vmatprep.subr.bf16.mxu0 0
        %781 = vmatpush2.bf16.msra.mxu0 0
        %782 = vmatprep.subr.bf16.mxu0 0
        %783 = vmatpush2.bf16.msra.mxu0 0
        %784 = vmatprep.subr.bf16.mxu0 0
        %785 = vmatpush2.bf16.msra.mxu0 0
        %786 = vmatprep.subr.bf16.mxu0 0
        %787 = vmatpush2.bf16.msra.mxu0 0
        %788 = vmatprep.subr.bf16.mxu0 0
        %789 = vmatpush2.bf16.msra.mxu0 0
        %790 = vmatprep.subr.bf16.mxu0 0
        %791 = vmatpush2.bf16.msra.mxu0 0
        %792 = vmatprep.subr.bf16.mxu0 0
        %793 = vmatpush2.bf16.msra.mxu0 0
        %794 = vmatprep.mubr.bf16.mxu0 0
        %795 = vmatmul.mubr.bf16.gmra.mxu0 %v760
        %v796 = vpop.f32.mrf.mxu0
        %v797 = vadd.f32 %v745, %v796
        %v798 = vpop.f32.mrf.mxu0
        %v799 = vpop.f32.mrf.mxu0
        %v800 = vpop.f32.mrf.mxu0
        %801 = vdwg.mxu0
        %v802 = vld [vmem:[%s623] sm:$0xf]
        %v803 = vld [vmem:[%s623 + $0x4] sm:$0xf]
        %v804 = vld [vmem:[%s623 + $0x8] sm:$0xf]
        %v805 = vld [vmem:[%s623 + $0xc] sm:$0xf]
        %v806 = vld [vmem:[%s626] sm:$0x1]
        %v808 = vlaneseq
        %v809 = vshrl.u32 %v808, 7
        %v810 = vsub.s32 0, %v809
        %v811 = vrot.slane %v806, %v810
        %v817 = vunpack.c.l.b16 %v802
        %v818 = vunpack.c.l.b16 %v803
        %v819 = vunpack.c.l.b16 %v804
        %v820 = vunpack.c.l.b16 %v805
        %v821 = vpack.c.b16 %v818, %v817
        %v822 = vpack.c.b16 %v820, %v819
        %825 = vmatprep.subr.bf16.mxu0 0
        %826 = vmatpush1.bf16.msra.mxu0 0
        %827 = vmatprep.subr.bf16.mxu0 0
        %828 = vmatpush1.bf16.msra.mxu0 0
        %829 = vmatprep.subr.bf16.mxu0 0
        %830 = vmatpush1.bf16.msra.mxu0 0
        %831 = vmatprep.subr.bf16.mxu0 0
        %832 = vmatpush1.bf16.msra.mxu0 0
        %833 = vmatprep.subr.bf16.mxu0 0
        %834 = vmatpush1.bf16.msra.mxu0 0
        %835 = vmatprep.subr.bf16.mxu0 0
        %836 = vmatpush1.bf16.msra.mxu0 0
        %837 = vmatprep.subr.bf16.mxu0 0
        %838 = vmatpush1.bf16.msra.mxu0 %v822
        %839 = vmatprep.subr.bf16.mxu0 0
        %840 = vmatpush1.bf16.msra.mxu0 %v821
        %841 = vmatprep.subr.bf16.mxu0 0
        %842 = vmatpush2.bf16.msra.mxu0 0
        %843 = vmatprep.subr.bf16.mxu0 0
        %844 = vmatpush2.bf16.msra.mxu0 0
        %845 = vmatprep.subr.bf16.mxu0 0
        %846 = vmatpush2.bf16.msra.mxu0 0
        %847 = vmatprep.subr.bf16.mxu0 0
        %848 = vmatpush2.bf16.msra.mxu0 0
        %849 = vmatprep.subr.bf16.mxu0 0
        %850 = vmatpush2.bf16.msra.mxu0 0
        %851 = vmatprep.subr.bf16.mxu0 0
        %852 = vmatpush2.bf16.msra.mxu0 0
        %853 = vmatprep.subr.bf16.mxu0 0
        %854 = vmatpush2.bf16.msra.mxu0 0
        %855 = vmatprep.subr.bf16.mxu0 0
        %856 = vmatpush2.bf16.msra.mxu0 0
        %857 = vmatprep.mubr.bf16.mxu0 0
        %858 = vmatmul.mubr.bf16.gmra.mxu0 %v760
        %v859 = vpop.f32.mrf.mxu0
        %v860 = vadd.f32 %v811, %v859
        %v861 = vpop.f32.mrf.mxu0
        %v862 = vpop.f32.mrf.mxu0
        %v863 = vpop.f32.mrf.mxu0
        %864 = vdwg.mxu0
        %v865 = vpack.c.bf16 %v731, %v731
        %v866 = vpack.c.bf16 %v797, %v797
        %vm867 = vcmask 64512
        %v869 = vsel %vm867, %v865, 0
        %v872 = vsel %vm867, %v866, 0
        %874 = vmatprep.subr.bf16.mxu0 0
        %875 = vmatpush1.bf16.xpose.msra.mxu0 0
        %876 = vmatprep.subr.bf16.mxu0 0
        %877 = vmatpush1.bf16.xpose.msra.mxu0 0
        %878 = vmatprep.subr.bf16.mxu0 0
        %879 = vmatpush1.bf16.xpose.msra.mxu0 0
        %880 = vmatprep.subr.bf16.mxu0 0
        %881 = vmatpush1.bf16.xpose.msra.mxu0 0
        %882 = vmatprep.subr.bf16.mxu0 0
        %883 = vmatpush1.bf16.xpose.msra.mxu0 0
        %884 = vmatprep.subr.bf16.mxu0 0
        %885 = vmatpush1.bf16.xpose.msra.mxu0 0
        %886 = vmatprep.subr.bf16.mxu0 0
        %887 = vmatpush1.bf16.xpose.msra.mxu0 0
        %888 = vmatprep.subr.bf16.mxu0 0
        %889 = vmatpush1.bf16.xpose.msra.mxu0 %v872
        %890 = vmatprep.subr.bf16.mxu0 0
        %891 = vmatpush2.bf16.xpose.msra.mxu0 0
        %892 = vmatprep.subr.bf16.mxu0 0
        %893 = vmatpush2.bf16.xpose.msra.mxu0 0
        %894 = vmatprep.subr.bf16.mxu0 0
        %895 = vmatpush2.bf16.xpose.msra.mxu0 0
        %896 = vmatprep.subr.bf16.mxu0 0
        %897 = vmatpush2.bf16.xpose.msra.mxu0 0
        %898 = vmatprep.subr.bf16.mxu0 0
        %899 = vmatpush2.bf16.xpose.msra.mxu0 0
        %900 = vmatprep.subr.bf16.mxu0 0
        %901 = vmatpush2.bf16.xpose.msra.mxu0 0
        %902 = vmatprep.subr.bf16.mxu0 0
        %903 = vmatpush2.bf16.xpose.msra.mxu0 0
        %904 = vmatprep.subr.bf16.mxu0 0
        %905 = vmatpush2.bf16.xpose.msra.mxu0 0
        %906 = vmatprep.mubr.bf16.mxu0 0
        %907 = vmatmul.mubr.bf16.gmra.mxu0 %v869
        %v908 = vpop.f32.mrf.mxu0
        %v909 = vadd.f32 0.0, %v908
        %v910 = vpop.f32.mrf.mxu0
        %v911 = vpop.f32.mrf.mxu0
        %v912 = vpop.f32.mrf.mxu0
        %913 = vdwg.mxu0
        %v914 = vsel %vm867, %v909, -inf
        %915 = vmax.xlane.f32.xlu0 %v914
        %v916 = vpop.xlane.xlu0 %915
        %v917 = vsub.f32 %v909, %v916
        %v918 = vmul.f32 %v917, 1.442695
        %v919 = vpow.pop %v918
        %v920 = vsel %vm867, %v919, 0.0
        %921 = vadd.xlane.f32.xlu0 %v920
        %v922 = vpop.xlane.xlu0 %921
        %v923 = vrcp.pop %v922
        %v924 = vmul.f32 %v919, %v923
        %v925 = vpack.c.bf16 %v924, %v924
        %v926 = vpack.c.bf16 %v860, %v860
        %v928 = vsel %vm867, %v925, 0
        %vm930 = vcmask 1043456
        %v932 = vsel %vm930, %v926, 0
        %934 = vmatprep.subr.bf16.mxu0 0
        %935 = vmatpush1.bf16.msra.mxu0 0
        %936 = vmatprep.subr.bf16.mxu0 0
        %937 = vmatpush1.bf16.msra.mxu0 0
        %938 = vmatprep.subr.bf16.mxu0 0
        %939 = vmatpush1.bf16.msra.mxu0 0
        %940 = vmatprep.subr.bf16.mxu0 0
        %941 = vmatpush1.bf16.msra.mxu0 0
        %942 = vmatprep.subr.bf16.mxu0 0
        %943 = vmatpush1.bf16.msra.mxu0 0
        %944 = vmatprep.subr.bf16.mxu0 0
        %945 = vmatpush1.bf16.msra.mxu0 0
        %946 = vmatprep.subr.bf16.mxu0 0
        %947 = vmatpush1.bf16.msra.mxu0 0
        %948 = vmatprep.subr.bf16.mxu0 0
        %949 = vmatpush1.bf16.msra.mxu0 %v932
        %950 = vmatprep.subr.bf16.mxu0 0
        %951 = vmatpush2.bf16.msra.mxu0 0
        %952 = vmatprep.subr.bf16.mxu0 0
        %953 = vmatpush2.bf16.msra.mxu0 0
        %954 = vmatprep.subr.bf16.mxu0 0
        %955 = vmatpush2.bf16.msra.mxu0 0
        %956 = vmatprep.subr.bf16.mxu0 0
        %957 = vmatpush2.bf16.msra.mxu0 0
        %958 = vmatprep.subr.bf16.mxu0 0
        %959 = vmatpush2.bf16.msra.mxu0 0
        %960 = vmatprep.subr.bf16.mxu0 0
        %961 = vmatpush2.bf16.msra.mxu0 0
        %962 = vmatprep.subr.bf16.mxu0 0
        %963 = vmatpush2.bf16.msra.mxu0 0
        %964 = vmatprep.subr.bf16.mxu0 0
        %965 = vmatpush2.bf16.msra.mxu0 0
        %966 = vmatprep.mubr.bf16.mxu0 0
        %967 = vmatmul.mubr.bf16.gmra.mxu0 %v928
        %v968 = vpop.f32.mrf.mxu0
        %v969 = vadd.f32 0.0, %v968
        %v970 = vpop.f32.mrf.mxu0
        %v971 = vpop.f32.mrf.mxu0
        %v972 = vpop.f32.mrf.mxu0
        %973 = vdwg.mxu0
        %v974 = vld [vmem:[#allocation2] sm:$0xff]
        %v975 = vpack.c.bf16 %v969, %v969
        %v976 = vld [vmem:[%s630] sm:$0xf]
        %v978 = vsel %vm867, %v975, 0
        %v981 = vsel %vm930, %v976, 0
        %983 = vmatprep.subr.bf16.mxu0 0
        %984 = vmatpush1.bf16.msra.mxu0 0
        %985 = vmatprep.subr.bf16.mxu0 0
        %986 = vmatpush1.bf16.msra.mxu0 0
        %987 = vmatprep.subr.bf16.mxu0 0
        %988 = vmatpush1.bf16.msra.mxu0 0
        %989 = vmatprep.subr.bf16.mxu0 0
        %990 = vmatpush1.bf16.msra.mxu0 0
        %991 = vmatprep.subr.bf16.mxu0 0
        %992 = vmatpush1.bf16.msra.mxu0 0
        %993 = vmatprep.subr.bf16.mxu0 0
        %994 = vmatpush1.bf16.msra.mxu0 0
        %995 = vmatprep.subr.bf16.mxu0 0
        %996 = vmatpush1.bf16.msra.mxu0 0
        %997 = vmatprep.subr.bf16.mxu0 0
        %998 = vmatpush1.bf16.msra.mxu0 %v981
        %999 = vmatprep.subr.bf16.mxu0 0
        %1000 = vmatpush2.bf16.msra.mxu0 0
        %1001 = vmatprep.subr.bf16.mxu0 0
        %1002 = vmatpush2.bf16.msra.mxu0 0
        %1003 = vmatprep.subr.bf16.mxu0 0
        %1004 = vmatpush2.bf16.msra.mxu0 0
        %1005 = vmatprep.subr.bf16.mxu0 0
        %1006 = vmatpush2.bf16.msra.mxu0 0
        %1007 = vmatprep.subr.bf16.mxu0 0
        %1008 = vmatpush2.bf16.msra.mxu0 0
        %1009 = vmatprep.subr.bf16.mxu0 0
        %1010 = vmatpush2.bf16.msra.mxu0 0
        %1011 = vmatprep.subr.bf16.mxu0 0
        %1012 = vmatpush2.bf16.msra.mxu0 0
        %1013 = vmatprep.subr.bf16.mxu0 0
        %1014 = vmatpush2.bf16.msra.mxu0 0
        %1015 = vmatprep.mubr.bf16.mxu0 0
        %1016 = vmatmul.mubr.bf16.gmra.mxu0 %v978
        %v1017 = vpop.f32.mrf.mxu0
        %v1018 = vadd.f32 0.0, %v1017
        %v1019 = vpop.f32.mrf.mxu0
        %v1020 = vpop.f32.mrf.mxu0
        %v1021 = vpop.f32.mrf.mxu0
        %1022 = vdwg.mxu0
        %v1023 = vadd.f32 %v974, %v1018
        %1024 = vst.msk [vmem:[#allocation2] sm:$0xff] %vm639, %v1023
        %p1025 = scmp.eq.s32.totalorder %s35, 3
        // Predicated region
        $region81: #{tpu_custom_call.1} parent=75 // pred_check
          %p1026 = pneg %p1025
        $region82: #{tpu_custom_call.1} parent=75 // pred_check_branch
          %1028 = sbr.rel (%p1026) target = $region84
        $region83: #{tpu_custom_call.1} parent=75 // pred_region
          %v1029 = vld [vmem:[#allocation2] sm:$0xff]
          %v1030 = vadd.f32 %v653, %v1029
          %v1031 = vld [vmem:[%s9] sm:$0x1]
          %v1033 = vlaneseq
          %v1034 = vshrl.u32 %v1033, 7
          %v1035 = vsub.s32 0, %v1034
          %v1036 = vrot.slane %v1031, %v1035
          %v1038 = vadd.f32 %v1030, %v1036
          %v1039 = vsel %vm639, %v1038, 0.0
          %1040 = vadd.xlane.f32.xlu0 %v1039
          %v1041 = vpop.xlane.xlu0 %1040
          %v1042 = vmul.f32 %v1041, %v643
          %v1043 = vsub.f32 %v1038, %v1042
          %v1044 = vmul.f32 %v1043, %v1043
          %v1045 = vsel %vm639, %v1044, 0.0
          %1046 = vadd.xlane.f32.xlu0 %v1045
          %v1047 = vpop.xlane.xlu0 %1046
          %v1048 = vmul.f32 %v1047, %v643
          %v1049 = vadd.f32 %v1048, 1e-06
          %v1050 = vrsqrt.pop %v1049
          %v1051 = vmul.f32 %v1043, %v1050
          %v1052 = vpack.c.bf16 %v1051, %v1051
          %v1053 = vld [vmem:[%s10] sm:$0xf]
          %v1054 = vld [vmem:[%s10 + $0x4] sm:$0xf]
          %v1055 = vld [vmem:[%s10 + $0x8] sm:$0xf]
          %v1056 = vld [vmem:[%s10 + $0xc] sm:$0xf]
          %v1057 = vld [vmem:[%s11] sm:$0x1]
          %v1059 = vlaneseq
          %v1060 = vshrl.u32 %v1059, 7
          %v1061 = vsub.s32 0, %v1060
          %v1062 = vrot.slane %v1057, %v1061
          %v1068 = vunpack.c.l.b16 %v1053
          %v1069 = vunpack.c.l.b16 %v1054
          %v1070 = vunpack.c.l.b16 %v1055
          %v1071 = vunpack.c.l.b16 %v1056
          %v1072 = vpack.c.b16 %v1069, %v1068
          %v1073 = vpack.c.b16 %v1071, %v1070
          %v1077 = vsel %vm639, %v1052, 0
          %1079 = vmatprep.subr.bf16.mxu0 0
          %1080 = vmatpush1.bf16.msra.mxu0 0
          %1081 = vmatprep.subr.bf16.mxu0 0
          %1082 = vmatpush1.bf16.msra.mxu0 0
          %1083 = vmatprep.subr.bf16.mxu0 0
          %1084 = vmatpush1.bf16.msra.mxu0 0
          %1085 = vmatprep.subr.bf16.mxu0 0
          %1086 = vmatpush1.bf16.msra.mxu0 0
          %1087 = vmatprep.subr.bf16.mxu0 0
          %1088 = vmatpush1.bf16.msra.mxu0 0
          %1089 = vmatprep.subr.bf16.mxu0 0
          %1090 = vmatpush1.bf16.msra.mxu0 0
          %1091 = vmatprep.subr.bf16.mxu0 0
          %1092 = vmatpush1.bf16.msra.mxu0 %v1073
          %1093 = vmatprep.subr.bf16.mxu0 0
          %1094 = vmatpush1.bf16.msra.mxu0 %v1072
          %1095 = vmatprep.subr.bf16.mxu0 0
          %1096 = vmatpush2.bf16.msra.mxu0 0
          %1097 = vmatprep.subr.bf16.mxu0 0
          %1098 = vmatpush2.bf16.msra.mxu0 0
          %1099 = vmatprep.subr.bf16.mxu0 0
          %1100 = vmatpush2.bf16.msra.mxu0 0
          %1101 = vmatprep.subr.bf16.mxu0 0
          %1102 = vmatpush2.bf16.msra.mxu0 0
          %1103 = vmatprep.subr.bf16.mxu0 0
          %1104 = vmatpush2.bf16.msra.mxu0 0
          %1105 = vmatprep.subr.bf16.mxu0 0
          %1106 = vmatpush2.bf16.msra.mxu0 0
          %1107 = vmatprep.subr.bf16.mxu0 0
          %1108 = vmatpush2.bf16.msra.mxu0 0
          %1109 = vmatprep.subr.bf16.mxu0 0
          %1110 = vmatpush2.bf16.msra.mxu0 0
          %1111 = vmatprep.mubr.bf16.mxu0 0
          %1112 = vmatmul.mubr.bf16.gmra.mxu0 %v1077
          %v1113 = vpop.f32.mrf.mxu0
          %v1114 = vadd.f32 %v1062, %v1113
          %v1115 = vpop.f32.mrf.mxu0
          %v1116 = vpop.f32.mrf.mxu0
          %v1117 = vpop.f32.mrf.mxu0
          %1118 = vdwg.mxu0
          %v1119 = vmul.f32 %v1114, 0.5
          %v1120 = vmul.f32 %v1114, 0.70710677
          %v1121 = verf.f32.pop %v1120
          %v1122 = vadd.f32 %v1121, 1.0
          %v1123 = vmul.f32 %v1119, %v1122
          %v1124 = vpack.c.bf16 %v1123, %v1123
          %v1125 = vld [vmem:[%s12] sm:$0xf]
          %v1126 = vld [vmem:[%s12 + $0x4] sm:$0xf]
          %v1127 = vld [vmem:[%s12 + $0x8] sm:$0xf]
          %v1128 = vld [vmem:[%s12 + $0xc] sm:$0xf]
          %v1129 = vld [vmem:[%s12 + $0x10] sm:$0xf]
          %v1130 = vld [vmem:[%s12 + $0x14] sm:$0xf]
          %v1131 = vld [vmem:[%s12 + $0x18] sm:$0xf]
          %v1132 = vld [vmem:[%s12 + $0x1c] sm:$0xf]
          %v1133 = vld [vmem:[%s12 + $0x20] sm:$0xf]
          %v1134 = vld [vmem:[%s12 + $0x24] sm:$0xf]
          %v1135 = vld [vmem:[%s12 + $0x28] sm:$0xf]
          %v1136 = vld [vmem:[%s12 + $0x2c] sm:$0xf]
          %v1137 = vld [vmem:[%s12 + $0x30] sm:$0xf]
          %v1138 = vld [vmem:[%s12 + $0x34] sm:$0xf]
          %v1139 = vld [vmem:[%s12 + $0x38] sm:$0xf]
          %v1140 = vld [vmem:[%s12 + $0x3c] sm:$0xf]
          %v1141 = vld [vmem:[%s13] sm:$0x1]
          %v1143 = vlaneseq
          %v1144 = vshrl.u32 %v1143, 7
          %v1145 = vsub.s32 0, %v1144
          %v1146 = vrot.slane %v1141, %v1145
          %v1164 = vunpack.c.l.b16 %v1125
          %v1165 = vunpack.c.l.b16 %v1126
          %v1166 = vunpack.c.l.b16 %v1127
          %v1167 = vunpack.c.l.b16 %v1128
          %v1168 = vunpack.c.l.b16 %v1129
          %v1169 = vunpack.c.l.b16 %v1130
          %v1170 = vunpack.c.l.b16 %v1131
          %v1171 = vunpack.c.l.b16 %v1132
          %v1172 = vunpack.c.l.b16 %v1133
          %v1173 = vunpack.c.l.b16 %v1134
          %v1174 = vunpack.c.l.b16 %v1135
          %v1175 = vunpack.c.l.b16 %v1136
          %v1176 = vunpack.c.l.b16 %v1137
          %v1177 = vunpack.c.l.b16 %v1138
          %v1178 = vunpack.c.l.b16 %v1139
          %v1179 = vunpack.c.l.b16 %v1140
          %v1180 = vpack.c.b16 %v1165, %v1164
          %v1181 = vpack.c.b16 %v1167, %v1166
          %v1182 = vpack.c.b16 %v1169, %v1168
          %v1183 = vpack.c.b16 %v1171, %v1170
          %v1184 = vpack.c.b16 %v1173, %v1172
          %v1185 = vpack.c.b16 %v1175, %v1174
          %v1186 = vpack.c.b16 %v1177, %v1176
          %v1187 = vpack.c.b16 %v1179, %v1178
          %1196 = vmatprep.subr.bf16.mxu0 0
          %1197 = vmatpush1.bf16.msra.mxu0 %v1187
          %1198 = vmatprep.subr.bf16.mxu0 0
          %1199 = vmatpush1.bf16.msra.mxu0 %v1186
          %1200 = vmatprep.subr.bf16.mxu0 0
          %1201 = vmatpush1.bf16.msra.mxu0 %v1185
          %1202 = vmatprep.subr.bf16.mxu0 0
          %1203 = vmatpush1.bf16.msra.mxu0 %v1184
          %1204 = vmatprep.subr.bf16.mxu0 0
          %1205 = vmatpush1.bf16.msra.mxu0 %v1183
          %1206 = vmatprep.subr.bf16.mxu0 0
          %1207 = vmatpush1.bf16.msra.mxu0 %v1182
          %1208 = vmatprep.subr.bf16.mxu0 0
          %1209 = vmatpush1.bf16.msra.mxu0 %v1181
          %1210 = vmatprep.subr.bf16.mxu0 0
          %1211 = vmatpush1.bf16.msra.mxu0 %v1180
          %1212 = vmatprep.subr.bf16.mxu0 0
          %1213 = vmatpush2.bf16.msra.mxu0 0
          %1214 = vmatprep.subr.bf16.mxu0 0
          %1215 = vmatpush2.bf16.msra.mxu0 0
          %1216 = vmatprep.subr.bf16.mxu0 0
          %1217 = vmatpush2.bf16.msra.mxu0 0
          %1218 = vmatprep.subr.bf16.mxu0 0
          %1219 = vmatpush2.bf16.msra.mxu0 0
          %1220 = vmatprep.subr.bf16.mxu0 0
          %1221 = vmatpush2.bf16.msra.mxu0 0
          %1222 = vmatprep.subr.bf16.mxu0 0
          %1223 = vmatpush2.bf16.msra.mxu0 0
          %1224 = vmatprep.subr.bf16.mxu0 0
          %1225 = vmatpush2.bf16.msra.mxu0 0
          %1226 = vmatprep.subr.bf16.mxu0 0
          %1227 = vmatpush2.bf16.msra.mxu0 0
          %1228 = vmatprep.mubr.bf16.mxu0 0
          %1229 = vmatmul.mubr.bf16.gmra.mxu0 %v1124
          %v1230 = vpop.f32.mrf.mxu0
          %v1231 = vadd.f32 %v1146, %v1230
          %v1232 = vpop.f32.mrf.mxu0
          %v1233 = vpop.f32.mrf.mxu0
          %v1234 = vpop.f32.mrf.mxu0
          %1235 = vdwg.mxu0
          %v1236 = vadd.f32 %v1038, %v1231
          %1237 = vst.msk [vmem:[%s591] sm:$0xff] %vm639, %v1236
        $region84: #{tpu_custom_call.1} parent=75 // pred_fallthru
          _
        %s1238 = sand.u32 %s398, 1
        %s1239 = scalar_lea.sflag [#allocation4], %s1238
        %s1240 = sand.u32 %s398, 1
        %s1241 = smul.addr %s1240, 8
        %s1242 = scalar_lea.vmem [#allocation3], %s1241
        // Predicated region
        $region85: #{tpu_custom_call.1} parent=75 // pred_check
          %p1243 = pneg %p408
        $region86: #{tpu_custom_call.1} parent=75 // pred_check_branch
          %1245 = sbr.rel (%p1243) target = $region88
        $region87: #{tpu_custom_call.1} parent=75 // pred_region
          %s1247 = ssub.s32 128, 128
          %1248 = vsyncadd %s1239, %s1247
          %s1249 = sadd.s32 %s34, %s33
          %s1250 = smul.addr %s1249, 128
          %s1251 = scalar_lea.hbm %s14, %s1250
          %s1253 = sshll.u32 %s1242, 4
          %s1254 = int_to_ptr.vmem [resolvable:$true] %s1253
          %1256 = dma.vmem_to_hbm [thread:$0]  %s1254, 128, %s1251, %s1239
        $region88: #{tpu_custom_call.1} parent=75 // pred_fallthru
          _
      $region76: #{tpu_custom_call.1} parent=5 // pred_fallthru
        _
      %p1257 = scmp.le.s32.totalorder 2, %s23
      // Predicated region
      $region89: #{tpu_custom_call.1} parent=5 // pred_check
        %p1258 = pneg %p1257
      $region90: #{tpu_custom_call.1} parent=5 // pred_check_branch
        %1260 = sbr.rel (%p1258) target = $region92
      $region91: #{tpu_custom_call.1} parent=5 // pred_region
        %s1261 = ssub.s32 %s23, 2
        // Predicated region
        $region93: #{tpu_custom_call.1} parent=91 // pred_check
          %p1262 = pneg %p414
        $region94: #{tpu_custom_call.1} parent=91 // pred_check_branch
          %1264 = sbr.rel (%p1262) target = $region96
        $region95: #{tpu_custom_call.1} parent=91 // pred_region
          %s1265 = sand.u32 %s399, 1
          %s1266 = scalar_lea.sflag [#allocation4], %s1265
          %s1267 = sand.u32 %s399, 1
          %s1268 = smul.addr %s1267, 8
          %s1269 = scalar_lea.vmem [#allocation3], %s1268
          %1270 = dma.done %s1266, 128
        $region96: #{tpu_custom_call.1} parent=91 // pred_fallthru
          _
      $region92: #{tpu_custom_call.1} parent=5 // pred_fallthru
        _
    $region6: #{tpu_custom_call.1} parent=1 // loop_footer
      %s27 = sadd.s32 1, %s23
    $region7: #{tpu_custom_call.1} parent=1 // loop_footer_branch
      %22 = sbr.rel target = $region3
    $region8: #{tpu_custom_call.1} parent=1 // loop_exit
      _
    %1271 = vsyncpa [#allocation4], 1
    %s1272 = scalar_lea.sflag [#allocation4], 1
    %1273 = vsyncpa %s1272, 1

</llo_original>
